<compile_context>
chip_gen: v5e
topology: v5e:2x2
jax: 0.10.0
libtpu: 0.0.40
codegen_flags: <defaults>
</compile_context>

<pallas_src>
import functools

import jax
import jax.numpy as jnp
from jax.experimental import pallas as pl
from jax.experimental.pallas import tpu as pltpu


def d_cnn_kernel(x_ref, wpack_ref, s_ref, out_ref, *,
                 kernel_size, pool_size, n_filters):
    """One batch tile of the full D_CNN forward, batch on the lane axis.

    x_ref    : (L, TB)       concatenated (condition, prediction), raw, batch on lanes
    wpack_ref: (LAT, D + 2)  [lin1_w (PyTorch flatten order) | lin1_b | lin2_w^T]
    s_ref    : (NS,)  SMEM   [w1/std | folded b1 | w2 | b2 | b4]
    out_ref  : (1, TB)       sigmoid output, batch on lanes
    """
    L, TB = x_ref.shape
    K = kernel_size
    P = pool_size
    F = n_filters
    C2 = 2 * F
    L1 = L - K + 1
    L2 = L1 - K + 1
    Lp = L2 // P
    D = C2 * Lp

    # Offsets into the packed scalar operand.
    o_w1 = 0                       # F*K
    o_b1 = o_w1 + F * K            # F
    o_w2 = o_b1 + F                # C2*F*K
    o_b2 = o_w2 + C2 * F * K       # C2
    o_b4 = o_b2 + C2               # 1

    x = x_ref[...]                                        # (L, TB) f32

    # ---- Conv1d(1 -> F) (+ folded (x-mean)/std) + ReLU : VPU scalar FMAs ----
    # K shifted sublane views of x, computed once and reused across filters.
    x_sh = [x[k:k + L1, :] for k in range(K)]
    h1 = []
    for f in range(F):
        acc = x_sh[0] * s_ref[o_w1 + f * K]
        for k in range(1, K):
            acc = acc + x_sh[k] * s_ref[o_w1 + f * K + k]
        h1.append(jnp.maximum(acc + s_ref[o_b1 + f], 0.0))          # (L1, TB)

    # ---- Conv1d(F -> 2F) + ReLU + MaxPool1d(P), per output channel ----
    # Shifted views of each h1 channel computed once, reused across all C2.
    h1_sh = [[h1[f][k:k + L2, :] for k in range(K)] for f in range(F)]
    pooled = []
    for g in range(C2):
        acc = None
        for f in range(F):
            for k in range(K):
                term = h1_sh[f][k] * s_ref[o_w2 + (g * F + f) * K + k]
                acc = term if acc is None else acc + term
        h2g = jnp.maximum(acc + s_ref[o_b2 + g], 0.0)               # (L2, TB)
        # MaxPool1d(P): sublane reshape + max over the window axis.
        pooled.append(jnp.max(h2g[:Lp * P, :].reshape(Lp, P, TB), axis=1))  # (Lp, TB)

    # Channel-major stacking == PyTorch Flatten order (index g*Lp + t).
    flat = jnp.concatenate(pooled, axis=0)                          # (D, TB)

    # ---- Linear(D -> LAT) + ReLU : one lane-dense MXU matmul ----
    wpack = wpack_ref[...]                                          # (LAT, D+2)
    w3 = wpack[:, :D]                                               # (LAT, D)
    b3 = wpack[:, D:D + 1]                                          # (LAT, 1)
    w4 = wpack[:, D + 1:D + 2]                                      # (LAT, 1)
    h3 = jnp.maximum(
        jnp.dot(w3, flat, preferred_element_type=jnp.float32) + b3, 0.0)   # (LAT, TB)

    # ---- Linear(LAT -> 1) + Sigmoid (numerically stable) ----
    logits = jnp.sum(h3 * w4, axis=0, keepdims=True) + s_ref[o_b4]  # (1, TB)
    e = jnp.exp(-jnp.abs(logits))
    out_ref[...] = jnp.where(logits >= 0.0, 1.0 / (1.0 + e), e / (1.0 + e))


def d_cnn_forward(condition, prediction, params, *, total_sequence_length,
                  condition_size, pool_size, mean=0.0, std=1.0,
                  batch_tile=None):
    """Plain-JAX glue: concat + transpose inputs, pack weights, call the kernel."""
    conv1_w, conv1_b, conv2_w, conv2_b, lin1_w, lin1_b, lin2_w, lin2_b = params
    L = total_sequence_length
    F, _, K = conv1_w.shape
    C2 = conv2_w.shape[0]
    LAT = lin1_w.shape[0]
    P = pool_size
    L2 = L - 2 * (K - 1)
    Lp = L2 // P
    D = C2 * Lp
    assert C2 == 2 * F, "module defines conv2 out_channels = 2 * n_filters"
    # The (x - mean)/std fold into conv1 is only valid for scalar mean/std.
    assert jnp.ndim(mean) == 0 and jnp.ndim(std) == 0, \
        "per-position mean/std cannot be folded into conv1"

    # torch.cat((condition, prediction.view(-1, L - condition_size)), dim=1)
    pred2d = prediction.reshape(-1, L - condition_size)
    x = jnp.concatenate([condition, pred2d], axis=1).astype(jnp.float32)   # (B, L)
    B = x.shape[0]
    x_t = x.T                                                              # (L, B): batch on lanes

    # Fold normalization into conv1 weight/bias.
    w1_fk = conv1_w[:, 0, :].astype(jnp.float32)                           # (F, K)
    w1_eff = w1_fk / std
    b1_eff = conv1_b.astype(jnp.float32) - (mean / std) * jnp.sum(w1_fk, axis=1)

    # All tiny conv/bias scalars packed into one SMEM operand.
    scalars = jnp.concatenate([
        w1_eff.reshape(-1), b1_eff.reshape(-1),
        conv2_w.astype(jnp.float32).reshape(-1),
        conv2_b.astype(jnp.float32).reshape(-1),
        lin2_b.astype(jnp.float32).reshape(-1)])                           # (F*K+F+C2*F*K+C2+1,)

    # Linear weights packed into one resident VMEM slab:
    #   cols [0:D) = lin1_w (PyTorch flatten order), D = lin1_b, D+1 = lin2_w^T.
    wpack = jnp.concatenate([
        lin1_w.astype(jnp.float32),
        lin1_b.astype(jnp.float32).reshape(LAT, 1),
        lin2_w.astype(jnp.float32).reshape(1, LAT).T], axis=1)             # (LAT, D+2)

    # Batch tile: large (amortize ~0.35 us/grid-step overhead), lane-aligned,
    # halved while B <= TB so the grid keeps >= 2 steps when possible (v7x).
    if batch_tile is None:
        TB = 2048
        while TB > 128 and B <= TB:
            TB //= 2
    else:
        TB = batch_tile
    assert TB % 128 == 0, "batch tile must be a multiple of 128 (lane width)"
    B_pad = ((B + TB - 1) // TB) * TB
    if B_pad != B:
        x_t = jnp.pad(x_t, ((0, 0), (0, B_pad - B)))

    kernel = functools.partial(d_cnn_kernel, kernel_size=K, pool_size=P,
                               n_filters=F)
    out = pl.pallas_call(
        kernel,
        out_shape=jax.ShapeDtypeStruct((1, B_pad), jnp.float32),
        grid=(B_pad // TB,),
        in_specs=[
            pl.BlockSpec((L, TB), lambda b: (0, b)),            # x^T: streamed batch tiles
            pl.BlockSpec((LAT, D + 2), lambda b: (0, 0)),       # packed linear weights: resident
            pl.BlockSpec(memory_space=pltpu.MemorySpace.SMEM),  # packed conv scalars
        ],
        out_specs=pl.BlockSpec((1, TB), lambda b: (0, b)),      # lane-dense output row
        compiler_params=pltpu.CompilerParams(
            dimension_semantics=("parallel",),                  # 2-TC sharding on v7x
            vmem_limit_bytes=48 * 1024 * 1024),                 # > v5e 16MiB default, < v7x 64MiB
    )(x_t, wpack, scalars)
    return out[0, :B].reshape(B, 1)


def d_cnn_reference(condition, prediction, params, *, total_sequence_length,
                    condition_size, pool_size, mean=0.0, std=1.0):
    """Pure-JAX reference mirroring the PyTorch module (NCL layout)."""
    conv1_w, conv1_b, conv2_w, conv2_b, lin1_w, lin1_b, lin2_w, lin2_b = params
    L = total_sequence_length
    x = jnp.concatenate(
        [condition, prediction.reshape(-1, L - condition_size)], axis=1)
    x = (x - mean) / std
    x = x.reshape(-1, 1, L)
    dn = ('NCH', 'OIH', 'NCH')
    h = jax.lax.conv_general_dilated(x, conv1_w, (1,), 'VALID',
                                     dimension_numbers=dn)
    h = jax.nn.relu(h + conv1_b[None, :, None])
    h = jax.lax.conv_general_dilated(h, conv2_w, (1,), 'VALID',
                                     dimension_numbers=dn)
    h = jax.nn.relu(h + conv2_b[None, :, None])
    B, C2, L2 = h.shape
    Lp = L2 // pool_size
    h = jnp.max(h[:, :, :Lp * pool_size].reshape(B, C2, Lp, pool_size), axis=-1)
    flat = h.reshape(B, -1)
    h3 = jax.nn.relu(flat @ lin1_w.T + lin1_b)
    return jax.nn.sigmoid(h3 @ lin2_w.T + lin2_b)


if __name__ == "__main__":
    # Hyperparameters consistent with the module's __init__.
    L, COND, LAT, F, K, P = 16, 8, 32, 4, 3, 2
    MEAN, STD = 0.5, 2.0
    C2 = 2 * F
    Lp = (L - 2 * (K - 1)) // P
    flat_dim = C2 * Lp  # int(2*n_filters*((L - 2*(K-1)) // P)) = 48

    key = jax.random.PRNGKey(0)
    ks = jax.random.split(key, 12)
    conv1_w = jax.random.normal(ks[0], (F, 1, K), jnp.float32) * 0.3
    conv1_b = jax.random.normal(ks[1], (F,), jnp.float32) * 0.1
    conv2_w = jax.random.normal(ks[2], (C2, F, K), jnp.float32) * 0.2
    conv2_b = jax.random.normal(ks[3], (C2,), jnp.float32) * 0.1
    lin1_w = jax.random.normal(ks[4], (LAT, flat_dim), jnp.float32) * 0.15
    lin1_b = jax.random.normal(ks[5], (LAT,), jnp.float32) * 0.1
    lin2_w = jax.random.normal(ks[6], (1, LAT), jnp.float32) * 0.15
    lin2_b = jax.random.normal(ks[7], (1,), jnp.float32) * 0.1
    params = (conv1_w, conv1_b, conv2_w, conv2_b,
              lin1_w, lin1_b, lin2_w, lin2_b)

    # --- Small-batch check (single grid step) ---
    B = 2
    condition = jax.random.normal(ks[8], (B, COND), jnp.float32)
    prediction = jax.random.normal(ks[9], (B, L - COND), jnp.float32)
    out = d_cnn_forward(condition, prediction, params,
                        total_sequence_length=L, condition_size=COND,
                        pool_size=P, mean=MEAN, std=STD)
    out = jax.block_until_ready(out)
    ref = d_cnn_reference(condition, prediction, params,
                          total_sequence_length=L, condition_size=COND,
                          pool_size=P, mean=MEAN, std=STD)
    assert out.shape == (B, 1), out.shape
    assert jnp.allclose(out, ref, atol=1e-4, rtol=1e-4), (out, ref)

    # --- Larger batch: exercises multi-step grid + batch padding ---
    B2 = 300
    condition2 = jax.random.normal(ks[10], (B2, COND), jnp.float32)
    prediction2 = jax.random.normal(ks[11], (B2, L - COND), jnp.float32)
    out2 = d_cnn_forward(condition2, prediction2, params,
                         total_sequence_length=L, condition_size=COND,
                         pool_size=P, mean=MEAN, std=STD)
    out2 = jax.block_until_ready(out2)
    ref2 = d_cnn_reference(condition2, prediction2, params,
                           total_sequence_length=L, condition_size=COND,
                           pool_size=P, mean=MEAN, std=STD)
    assert out2.shape == (B2, 1), out2.shape
    assert jnp.allclose(out2, ref2, atol=1e-4, rtol=1e-4)

    print("KERNEL_OK")
</pallas_src>

<mosaic_0001>
module attributes {stable_mosaic.version = 11 : i64} {
  func.func @d_cnn_kernel(%arg0: i32, %arg1: memref<16x128xf32, #tpu.memory_space<vmem>>, %arg2: memref<32x50xf32, #tpu.memory_space<vmem>>, %arg3: memref<121xf32, #tpu.memory_space<smem>>, %arg4: memref<1x128xf32, #tpu.memory_space<vmem>>) attributes {dimension_semantics = [#tpu.dimension_semantics<parallel>], iteration_bounds = array<i64: 1>, scalar_prefetch = 0 : i64, scratch_operands = 0 : i64, tpu.core_type = #tpu.core_type<tc>, window_params = [{transform_indices = @transform_0, window_bounds = array<i64: 16, 128>}, {pipeline_mode = #tpu.pipeline_mode<synchronous>, transform_indices = @transform_1, window_bounds = array<i64: 32, 50>}, {transform_indices = @transform_2, window_bounds = array<i64: 121>}, {transform_indices = @transform_3, window_bounds = array<i64: 1, 128>}]} {
    %c0 = arith.constant 0 : index
    %c0_0 = arith.constant 0 : index
    %0 = vector.load %arg1[%c0, %c0_0] : memref<16x128xf32, #tpu.memory_space<vmem>>, vector<16x128xf32>
    %1 = vector.extract_strided_slice %0 {offsets = [0, 0], sizes = [14, 128], strides = [1, 1]} : vector<16x128xf32> to vector<14x128xf32>
    %2 = vector.extract_strided_slice %0 {offsets = [1, 0], sizes = [14, 128], strides = [1, 1]} : vector<16x128xf32> to vector<14x128xf32>
    %3 = vector.extract_strided_slice %0 {offsets = [2, 0], sizes = [14, 128], strides = [1, 1]} : vector<16x128xf32> to vector<14x128xf32>
    %c0_1 = arith.constant 0 : index
    %4 = memref.load %arg3[%c0_1] : memref<121xf32, #tpu.memory_space<smem>>
    %5 = vector.broadcast %4 : f32 to vector<14x128xf32>
    %6 = arith.mulf %1, %5 : vector<14x128xf32>
    %c1 = arith.constant 1 : index
    %7 = memref.load %arg3[%c1] : memref<121xf32, #tpu.memory_space<smem>>
    %8 = vector.broadcast %7 : f32 to vector<14x128xf32>
    %9 = arith.mulf %2, %8 : vector<14x128xf32>
    %10 = arith.addf %6, %9 : vector<14x128xf32>
    %c2 = arith.constant 2 : index
    %11 = memref.load %arg3[%c2] : memref<121xf32, #tpu.memory_space<smem>>
    %12 = vector.broadcast %11 : f32 to vector<14x128xf32>
    %13 = arith.mulf %3, %12 : vector<14x128xf32>
    %14 = arith.addf %10, %13 : vector<14x128xf32>
    %c12 = arith.constant 12 : index
    %15 = memref.load %arg3[%c12] : memref<121xf32, #tpu.memory_space<smem>>
    %16 = vector.broadcast %15 : f32 to vector<14x128xf32>
    %17 = arith.addf %14, %16 : vector<14x128xf32>
    %cst = arith.constant 0.000000e+00 : f32
    %18 = vector.broadcast %cst : f32 to vector<14x128xf32>
    %19 = arith.maximumf %17, %18 : vector<14x128xf32>
    %c3 = arith.constant 3 : index
    %20 = memref.load %arg3[%c3] : memref<121xf32, #tpu.memory_space<smem>>
    %21 = vector.broadcast %20 : f32 to vector<14x128xf32>
    %22 = arith.mulf %1, %21 : vector<14x128xf32>
    %c4 = arith.constant 4 : index
    %23 = memref.load %arg3[%c4] : memref<121xf32, #tpu.memory_space<smem>>
    %24 = vector.broadcast %23 : f32 to vector<14x128xf32>
    %25 = arith.mulf %2, %24 : vector<14x128xf32>
    %26 = arith.addf %22, %25 : vector<14x128xf32>
    %c5 = arith.constant 5 : index
    %27 = memref.load %arg3[%c5] : memref<121xf32, #tpu.memory_space<smem>>
    %28 = vector.broadcast %27 : f32 to vector<14x128xf32>
    %29 = arith.mulf %3, %28 : vector<14x128xf32>
    %30 = arith.addf %26, %29 : vector<14x128xf32>
    %c13 = arith.constant 13 : index
    %31 = memref.load %arg3[%c13] : memref<121xf32, #tpu.memory_space<smem>>
    %32 = vector.broadcast %31 : f32 to vector<14x128xf32>
    %33 = arith.addf %30, %32 : vector<14x128xf32>
    %cst_2 = arith.constant 0.000000e+00 : f32
    %34 = vector.broadcast %cst_2 : f32 to vector<14x128xf32>
    %35 = arith.maximumf %33, %34 : vector<14x128xf32>
    %c6 = arith.constant 6 : index
    %36 = memref.load %arg3[%c6] : memref<121xf32, #tpu.memory_space<smem>>
    %37 = vector.broadcast %36 : f32 to vector<14x128xf32>
    %38 = arith.mulf %1, %37 : vector<14x128xf32>
    %c7 = arith.constant 7 : index
    %39 = memref.load %arg3[%c7] : memref<121xf32, #tpu.memory_space<smem>>
    %40 = vector.broadcast %39 : f32 to vector<14x128xf32>
    %41 = arith.mulf %2, %40 : vector<14x128xf32>
    %42 = arith.addf %38, %41 : vector<14x128xf32>
    %c8 = arith.constant 8 : index
    %43 = memref.load %arg3[%c8] : memref<121xf32, #tpu.memory_space<smem>>
    %44 = vector.broadcast %43 : f32 to vector<14x128xf32>
    %45 = arith.mulf %3, %44 : vector<14x128xf32>
    %46 = arith.addf %42, %45 : vector<14x128xf32>
    %c14 = arith.constant 14 : index
    %47 = memref.load %arg3[%c14] : memref<121xf32, #tpu.memory_space<smem>>
    %48 = vector.broadcast %47 : f32 to vector<14x128xf32>
    %49 = arith.addf %46, %48 : vector<14x128xf32>
    %cst_3 = arith.constant 0.000000e+00 : f32
    %50 = vector.broadcast %cst_3 : f32 to vector<14x128xf32>
    %51 = arith.maximumf %49, %50 : vector<14x128xf32>
    %c9 = arith.constant 9 : index
    %52 = memref.load %arg3[%c9] : memref<121xf32, #tpu.memory_space<smem>>
    %53 = vector.broadcast %52 : f32 to vector<14x128xf32>
    %54 = arith.mulf %1, %53 : vector<14x128xf32>
    %c10 = arith.constant 10 : index
    %55 = memref.load %arg3[%c10] : memref<121xf32, #tpu.memory_space<smem>>
    %56 = vector.broadcast %55 : f32 to vector<14x128xf32>
    %57 = arith.mulf %2, %56 : vector<14x128xf32>
    %58 = arith.addf %54, %57 : vector<14x128xf32>
    %c11 = arith.constant 11 : index
    %59 = memref.load %arg3[%c11] : memref<121xf32, #tpu.memory_space<smem>>
    %60 = vector.broadcast %59 : f32 to vector<14x128xf32>
    %61 = arith.mulf %3, %60 : vector<14x128xf32>
    %62 = arith.addf %58, %61 : vector<14x128xf32>
    %c15 = arith.constant 15 : index
    %63 = memref.load %arg3[%c15] : memref<121xf32, #tpu.memory_space<smem>>
    %64 = vector.broadcast %63 : f32 to vector<14x128xf32>
    %65 = arith.addf %62, %64 : vector<14x128xf32>
    %cst_4 = arith.constant 0.000000e+00 : f32
    %66 = vector.broadcast %cst_4 : f32 to vector<14x128xf32>
    %67 = arith.maximumf %65, %66 : vector<14x128xf32>
    %68 = vector.extract_strided_slice %19 {offsets = [0, 0], sizes = [12, 128], strides = [1, 1]} : vector<14x128xf32> to vector<12x128xf32>
    %69 = vector.extract_strided_slice %19 {offsets = [1, 0], sizes = [12, 128], strides = [1, 1]} : vector<14x128xf32> to vector<12x128xf32>
    %70 = vector.extract_strided_slice %19 {offsets = [2, 0], sizes = [12, 128], strides = [1, 1]} : vector<14x128xf32> to vector<12x128xf32>
    %71 = vector.extract_strided_slice %35 {offsets = [0, 0], sizes = [12, 128], strides = [1, 1]} : vector<14x128xf32> to vector<12x128xf32>
    %72 = vector.extract_strided_slice %35 {offsets = [1, 0], sizes = [12, 128], strides = [1, 1]} : vector<14x128xf32> to vector<12x128xf32>
    %73 = vector.extract_strided_slice %35 {offsets = [2, 0], sizes = [12, 128], strides = [1, 1]} : vector<14x128xf32> to vector<12x128xf32>
    %74 = vector.extract_strided_slice %51 {offsets = [0, 0], sizes = [12, 128], strides = [1, 1]} : vector<14x128xf32> to vector<12x128xf32>
    %75 = vector.extract_strided_slice %51 {offsets = [1, 0], sizes = [12, 128], strides = [1, 1]} : vector<14x128xf32> to vector<12x128xf32>
    %76 = vector.extract_strided_slice %51 {offsets = [2, 0], sizes = [12, 128], strides = [1, 1]} : vector<14x128xf32> to vector<12x128xf32>
    %77 = vector.extract_strided_slice %67 {offsets = [0, 0], sizes = [12, 128], strides = [1, 1]} : vector<14x128xf32> to vector<12x128xf32>
    %78 = vector.extract_strided_slice %67 {offsets = [1, 0], sizes = [12, 128], strides = [1, 1]} : vector<14x128xf32> to vector<12x128xf32>
    %79 = vector.extract_strided_slice %67 {offsets = [2, 0], sizes = [12, 128], strides = [1, 1]} : vector<14x128xf32> to vector<12x128xf32>
    %c16 = arith.constant 16 : index
    %80 = memref.load %arg3[%c16] : memref<121xf32, #tpu.memory_space<smem>>
    %81 = vector.broadcast %80 : f32 to vector<12x128xf32>
    %82 = arith.mulf %68, %81 : vector<12x128xf32>
    %c17 = arith.constant 17 : index
    %83 = memref.load %arg3[%c17] : memref<121xf32, #tpu.memory_space<smem>>
    %84 = vector.broadcast %83 : f32 to vector<12x128xf32>
    %85 = arith.mulf %69, %84 : vector<12x128xf32>
    %86 = arith.addf %82, %85 : vector<12x128xf32>
    %c18 = arith.constant 18 : index
    %87 = memref.load %arg3[%c18] : memref<121xf32, #tpu.memory_space<smem>>
    %88 = vector.broadcast %87 : f32 to vector<12x128xf32>
    %89 = arith.mulf %70, %88 : vector<12x128xf32>
    %90 = arith.addf %86, %89 : vector<12x128xf32>
    %c19 = arith.constant 19 : index
    %91 = memref.load %arg3[%c19] : memref<121xf32, #tpu.memory_space<smem>>
    %92 = vector.broadcast %91 : f32 to vector<12x128xf32>
    %93 = arith.mulf %71, %92 : vector<12x128xf32>
    %94 = arith.addf %90, %93 : vector<12x128xf32>
    %c20 = arith.constant 20 : index
    %95 = memref.load %arg3[%c20] : memref<121xf32, #tpu.memory_space<smem>>
    %96 = vector.broadcast %95 : f32 to vector<12x128xf32>
    %97 = arith.mulf %72, %96 : vector<12x128xf32>
    %98 = arith.addf %94, %97 : vector<12x128xf32>
    %c21 = arith.constant 21 : index
    %99 = memref.load %arg3[%c21] : memref<121xf32, #tpu.memory_space<smem>>
    %100 = vector.broadcast %99 : f32 to vector<12x128xf32>
    %101 = arith.mulf %73, %100 : vector<12x128xf32>
    %102 = arith.addf %98, %101 : vector<12x128xf32>
    %c22 = arith.constant 22 : index
    %103 = memref.load %arg3[%c22] : memref<121xf32, #tpu.memory_space<smem>>
    %104 = vector.broadcast %103 : f32 to vector<12x128xf32>
    %105 = arith.mulf %74, %104 : vector<12x128xf32>
    %106 = arith.addf %102, %105 : vector<12x128xf32>
    %c23 = arith.constant 23 : index
    %107 = memref.load %arg3[%c23] : memref<121xf32, #tpu.memory_space<smem>>
    %108 = vector.broadcast %107 : f32 to vector<12x128xf32>
    %109 = arith.mulf %75, %108 : vector<12x128xf32>
    %110 = arith.addf %106, %109 : vector<12x128xf32>
    %c24 = arith.constant 24 : index
    %111 = memref.load %arg3[%c24] : memref<121xf32, #tpu.memory_space<smem>>
    %112 = vector.broadcast %111 : f32 to vector<12x128xf32>
    %113 = arith.mulf %76, %112 : vector<12x128xf32>
    %114 = arith.addf %110, %113 : vector<12x128xf32>
    %c25 = arith.constant 25 : index
    %115 = memref.load %arg3[%c25] : memref<121xf32, #tpu.memory_space<smem>>
    %116 = vector.broadcast %115 : f32 to vector<12x128xf32>
    %117 = arith.mulf %77, %116 : vector<12x128xf32>
    %118 = arith.addf %114, %117 : vector<12x128xf32>
    %c26 = arith.constant 26 : index
    %119 = memref.load %arg3[%c26] : memref<121xf32, #tpu.memory_space<smem>>
    %120 = vector.broadcast %119 : f32 to vector<12x128xf32>
    %121 = arith.mulf %78, %120 : vector<12x128xf32>
    %122 = arith.addf %118, %121 : vector<12x128xf32>
    %c27 = arith.constant 27 : index
    %123 = memref.load %arg3[%c27] : memref<121xf32, #tpu.memory_space<smem>>
    %124 = vector.broadcast %123 : f32 to vector<12x128xf32>
    %125 = arith.mulf %79, %124 : vector<12x128xf32>
    %126 = arith.addf %122, %125 : vector<12x128xf32>
    %c112 = arith.constant 112 : index
    %127 = memref.load %arg3[%c112] : memref<121xf32, #tpu.memory_space<smem>>
    %128 = vector.broadcast %127 : f32 to vector<12x128xf32>
    %129 = arith.addf %126, %128 : vector<12x128xf32>
    %cst_5 = arith.constant 0.000000e+00 : f32
    %130 = vector.broadcast %cst_5 : f32 to vector<12x128xf32>
    %131 = arith.maximumf %129, %130 : vector<12x128xf32>
    %132 = vector.shape_cast %131 : vector<12x128xf32> to vector<6x2x128xf32>
    %cst_6 = arith.constant dense<0xFF800000> : vector<6x128xf32>
    %133 = vector.multi_reduction <maximumf>, %132, %cst_6 [1] : vector<6x2x128xf32> to vector<6x128xf32>
    %c28 = arith.constant 28 : index
    %134 = memref.load %arg3[%c28] : memref<121xf32, #tpu.memory_space<smem>>
    %135 = vector.broadcast %134 : f32 to vector<12x128xf32>
    %136 = arith.mulf %68, %135 : vector<12x128xf32>
    %c29 = arith.constant 29 : index
    %137 = memref.load %arg3[%c29] : memref<121xf32, #tpu.memory_space<smem>>
    %138 = vector.broadcast %137 : f32 to vector<12x128xf32>
    %139 = arith.mulf %69, %138 : vector<12x128xf32>
    %140 = arith.addf %136, %139 : vector<12x128xf32>
    %c30 = arith.constant 30 : index
    %141 = memref.load %arg3[%c30] : memref<121xf32, #tpu.memory_space<smem>>
    %142 = vector.broadcast %141 : f32 to vector<12x128xf32>
    %143 = arith.mulf %70, %142 : vector<12x128xf32>
    %144 = arith.addf %140, %143 : vector<12x128xf32>
    %c31 = arith.constant 31 : index
    %145 = memref.load %arg3[%c31] : memref<121xf32, #tpu.memory_space<smem>>
    %146 = vector.broadcast %145 : f32 to vector<12x128xf32>
    %147 = arith.mulf %71, %146 : vector<12x128xf32>
    %148 = arith.addf %144, %147 : vector<12x128xf32>
    %c32 = arith.constant 32 : index
    %149 = memref.load %arg3[%c32] : memref<121xf32, #tpu.memory_space<smem>>
    %150 = vector.broadcast %149 : f32 to vector<12x128xf32>
    %151 = arith.mulf %72, %150 : vector<12x128xf32>
    %152 = arith.addf %148, %151 : vector<12x128xf32>
    %c33 = arith.constant 33 : index
    %153 = memref.load %arg3[%c33] : memref<121xf32, #tpu.memory_space<smem>>
    %154 = vector.broadcast %153 : f32 to vector<12x128xf32>
    %155 = arith.mulf %73, %154 : vector<12x128xf32>
    %156 = arith.addf %152, %155 : vector<12x128xf32>
    %c34 = arith.constant 34 : index
    %157 = memref.load %arg3[%c34] : memref<121xf32, #tpu.memory_space<smem>>
    %158 = vector.broadcast %157 : f32 to vector<12x128xf32>
    %159 = arith.mulf %74, %158 : vector<12x128xf32>
    %160 = arith.addf %156, %159 : vector<12x128xf32>
    %c35 = arith.constant 35 : index
    %161 = memref.load %arg3[%c35] : memref<121xf32, #tpu.memory_space<smem>>
    %162 = vector.broadcast %161 : f32 to vector<12x128xf32>
    %163 = arith.mulf %75, %162 : vector<12x128xf32>
    %164 = arith.addf %160, %163 : vector<12x128xf32>
    %c36 = arith.constant 36 : index
    %165 = memref.load %arg3[%c36] : memref<121xf32, #tpu.memory_space<smem>>
    %166 = vector.broadcast %165 : f32 to vector<12x128xf32>
    %167 = arith.mulf %76, %166 : vector<12x128xf32>
    %168 = arith.addf %164, %167 : vector<12x128xf32>
    %c37 = arith.constant 37 : index
    %169 = memref.load %arg3[%c37] : memref<121xf32, #tpu.memory_space<smem>>
    %170 = vector.broadcast %169 : f32 to vector<12x128xf32>
    %171 = arith.mulf %77, %170 : vector<12x128xf32>
    %172 = arith.addf %168, %171 : vector<12x128xf32>
    %c38 = arith.constant 38 : index
    %173 = memref.load %arg3[%c38] : memref<121xf32, #tpu.memory_space<smem>>
    %174 = vector.broadcast %173 : f32 to vector<12x128xf32>
    %175 = arith.mulf %78, %174 : vector<12x128xf32>
    %176 = arith.addf %172, %175 : vector<12x128xf32>
    %c39 = arith.constant 39 : index
    %177 = memref.load %arg3[%c39] : memref<121xf32, #tpu.memory_space<smem>>
    %178 = vector.broadcast %177 : f32 to vector<12x128xf32>
    %179 = arith.mulf %79, %178 : vector<12x128xf32>
    %180 = arith.addf %176, %179 : vector<12x128xf32>
    %c113 = arith.constant 113 : index
    %181 = memref.load %arg3[%c113] : memref<121xf32, #tpu.memory_space<smem>>
    %182 = vector.broadcast %181 : f32 to vector<12x128xf32>
    %183 = arith.addf %180, %182 : vector<12x128xf32>
    %cst_7 = arith.constant 0.000000e+00 : f32
    %184 = vector.broadcast %cst_7 : f32 to vector<12x128xf32>
    %185 = arith.maximumf %183, %184 : vector<12x128xf32>
    %186 = vector.shape_cast %185 : vector<12x128xf32> to vector<6x2x128xf32>
    %cst_8 = arith.constant dense<0xFF800000> : vector<6x128xf32>
    %187 = vector.multi_reduction <maximumf>, %186, %cst_8 [1] : vector<6x2x128xf32> to vector<6x128xf32>
    %c40 = arith.constant 40 : index
    %188 = memref.load %arg3[%c40] : memref<121xf32, #tpu.memory_space<smem>>
    %189 = vector.broadcast %188 : f32 to vector<12x128xf32>
    %190 = arith.mulf %68, %189 : vector<12x128xf32>
    %c41 = arith.constant 41 : index
    %191 = memref.load %arg3[%c41] : memref<121xf32, #tpu.memory_space<smem>>
    %192 = vector.broadcast %191 : f32 to vector<12x128xf32>
    %193 = arith.mulf %69, %192 : vector<12x128xf32>
    %194 = arith.addf %190, %193 : vector<12x128xf32>
    %c42 = arith.constant 42 : index
    %195 = memref.load %arg3[%c42] : memref<121xf32, #tpu.memory_space<smem>>
    %196 = vector.broadcast %195 : f32 to vector<12x128xf32>
    %197 = arith.mulf %70, %196 : vector<12x128xf32>
    %198 = arith.addf %194, %197 : vector<12x128xf32>
    %c43 = arith.constant 43 : index
    %199 = memref.load %arg3[%c43] : memref<121xf32, #tpu.memory_space<smem>>
    %200 = vector.broadcast %199 : f32 to vector<12x128xf32>
    %201 = arith.mulf %71, %200 : vector<12x128xf32>
    %202 = arith.addf %198, %201 : vector<12x128xf32>
    %c44 = arith.constant 44 : index
    %203 = memref.load %arg3[%c44] : memref<121xf32, #tpu.memory_space<smem>>
    %204 = vector.broadcast %203 : f32 to vector<12x128xf32>
    %205 = arith.mulf %72, %204 : vector<12x128xf32>
    %206 = arith.addf %202, %205 : vector<12x128xf32>
    %c45 = arith.constant 45 : index
    %207 = memref.load %arg3[%c45] : memref<121xf32, #tpu.memory_space<smem>>
    %208 = vector.broadcast %207 : f32 to vector<12x128xf32>
    %209 = arith.mulf %73, %208 : vector<12x128xf32>
    %210 = arith.addf %206, %209 : vector<12x128xf32>
    %c46 = arith.constant 46 : index
    %211 = memref.load %arg3[%c46] : memref<121xf32, #tpu.memory_space<smem>>
    %212 = vector.broadcast %211 : f32 to vector<12x128xf32>
    %213 = arith.mulf %74, %212 : vector<12x128xf32>
    %214 = arith.addf %210, %213 : vector<12x128xf32>
    %c47 = arith.constant 47 : index
    %215 = memref.load %arg3[%c47] : memref<121xf32, #tpu.memory_space<smem>>
    %216 = vector.broadcast %215 : f32 to vector<12x128xf32>
    %217 = arith.mulf %75, %216 : vector<12x128xf32>
    %218 = arith.addf %214, %217 : vector<12x128xf32>
    %c48 = arith.constant 48 : index
    %219 = memref.load %arg3[%c48] : memref<121xf32, #tpu.memory_space<smem>>
    %220 = vector.broadcast %219 : f32 to vector<12x128xf32>
    %221 = arith.mulf %76, %220 : vector<12x128xf32>
    %222 = arith.addf %218, %221 : vector<12x128xf32>
    %c49 = arith.constant 49 : index
    %223 = memref.load %arg3[%c49] : memref<121xf32, #tpu.memory_space<smem>>
    %224 = vector.broadcast %223 : f32 to vector<12x128xf32>
    %225 = arith.mulf %77, %224 : vector<12x128xf32>
    %226 = arith.addf %222, %225 : vector<12x128xf32>
    %c50 = arith.constant 50 : index
    %227 = memref.load %arg3[%c50] : memref<121xf32, #tpu.memory_space<smem>>
    %228 = vector.broadcast %227 : f32 to vector<12x128xf32>
    %229 = arith.mulf %78, %228 : vector<12x128xf32>
    %230 = arith.addf %226, %229 : vector<12x128xf32>
    %c51 = arith.constant 51 : index
    %231 = memref.load %arg3[%c51] : memref<121xf32, #tpu.memory_space<smem>>
    %232 = vector.broadcast %231 : f32 to vector<12x128xf32>
    %233 = arith.mulf %79, %232 : vector<12x128xf32>
    %234 = arith.addf %230, %233 : vector<12x128xf32>
    %c114 = arith.constant 114 : index
    %235 = memref.load %arg3[%c114] : memref<121xf32, #tpu.memory_space<smem>>
    %236 = vector.broadcast %235 : f32 to vector<12x128xf32>
    %237 = arith.addf %234, %236 : vector<12x128xf32>
    %cst_9 = arith.constant 0.000000e+00 : f32
    %238 = vector.broadcast %cst_9 : f32 to vector<12x128xf32>
    %239 = arith.maximumf %237, %238 : vector<12x128xf32>
    %240 = vector.shape_cast %239 : vector<12x128xf32> to vector<6x2x128xf32>
    %cst_10 = arith.constant dense<0xFF800000> : vector<6x128xf32>
    %241 = vector.multi_reduction <maximumf>, %240, %cst_10 [1] : vector<6x2x128xf32> to vector<6x128xf32>
    %c52 = arith.constant 52 : index
    %242 = memref.load %arg3[%c52] : memref<121xf32, #tpu.memory_space<smem>>
    %243 = vector.broadcast %242 : f32 to vector<12x128xf32>
    %244 = arith.mulf %68, %243 : vector<12x128xf32>
    %c53 = arith.constant 53 : index
    %245 = memref.load %arg3[%c53] : memref<121xf32, #tpu.memory_space<smem>>
    %246 = vector.broadcast %245 : f32 to vector<12x128xf32>
    %247 = arith.mulf %69, %246 : vector<12x128xf32>
    %248 = arith.addf %244, %247 : vector<12x128xf32>
    %c54 = arith.constant 54 : index
    %249 = memref.load %arg3[%c54] : memref<121xf32, #tpu.memory_space<smem>>
    %250 = vector.broadcast %249 : f32 to vector<12x128xf32>
    %251 = arith.mulf %70, %250 : vector<12x128xf32>
    %252 = arith.addf %248, %251 : vector<12x128xf32>
    %c55 = arith.constant 55 : index
    %253 = memref.load %arg3[%c55] : memref<121xf32, #tpu.memory_space<smem>>
    %254 = vector.broadcast %253 : f32 to vector<12x128xf32>
    %255 = arith.mulf %71, %254 : vector<12x128xf32>
    %256 = arith.addf %252, %255 : vector<12x128xf32>
    %c56 = arith.constant 56 : index
    %257 = memref.load %arg3[%c56] : memref<121xf32, #tpu.memory_space<smem>>
    %258 = vector.broadcast %257 : f32 to vector<12x128xf32>
    %259 = arith.mulf %72, %258 : vector<12x128xf32>
    %260 = arith.addf %256, %259 : vector<12x128xf32>
    %c57 = arith.constant 57 : index
    %261 = memref.load %arg3[%c57] : memref<121xf32, #tpu.memory_space<smem>>
    %262 = vector.broadcast %261 : f32 to vector<12x128xf32>
    %263 = arith.mulf %73, %262 : vector<12x128xf32>
    %264 = arith.addf %260, %263 : vector<12x128xf32>
    %c58 = arith.constant 58 : index
    %265 = memref.load %arg3[%c58] : memref<121xf32, #tpu.memory_space<smem>>
    %266 = vector.broadcast %265 : f32 to vector<12x128xf32>
    %267 = arith.mulf %74, %266 : vector<12x128xf32>
    %268 = arith.addf %264, %267 : vector<12x128xf32>
    %c59 = arith.constant 59 : index
    %269 = memref.load %arg3[%c59] : memref<121xf32, #tpu.memory_space<smem>>
    %270 = vector.broadcast %269 : f32 to vector<12x128xf32>
    %271 = arith.mulf %75, %270 : vector<12x128xf32>
    %272 = arith.addf %268, %271 : vector<12x128xf32>
    %c60 = arith.constant 60 : index
    %273 = memref.load %arg3[%c60] : memref<121xf32, #tpu.memory_space<smem>>
    %274 = vector.broadcast %273 : f32 to vector<12x128xf32>
    %275 = arith.mulf %76, %274 : vector<12x128xf32>
    %276 = arith.addf %272, %275 : vector<12x128xf32>
    %c61 = arith.constant 61 : index
    %277 = memref.load %arg3[%c61] : memref<121xf32, #tpu.memory_space<smem>>
    %278 = vector.broadcast %277 : f32 to vector<12x128xf32>
    %279 = arith.mulf %77, %278 : vector<12x128xf32>
    %280 = arith.addf %276, %279 : vector<12x128xf32>
    %c62 = arith.constant 62 : index
    %281 = memref.load %arg3[%c62] : memref<121xf32, #tpu.memory_space<smem>>
    %282 = vector.broadcast %281 : f32 to vector<12x128xf32>
    %283 = arith.mulf %78, %282 : vector<12x128xf32>
    %284 = arith.addf %280, %283 : vector<12x128xf32>
    %c63 = arith.constant 63 : index
    %285 = memref.load %arg3[%c63] : memref<121xf32, #tpu.memory_space<smem>>
    %286 = vector.broadcast %285 : f32 to vector<12x128xf32>
    %287 = arith.mulf %79, %286 : vector<12x128xf32>
    %288 = arith.addf %284, %287 : vector<12x128xf32>
    %c115 = arith.constant 115 : index
    %289 = memref.load %arg3[%c115] : memref<121xf32, #tpu.memory_space<smem>>
    %290 = vector.broadcast %289 : f32 to vector<12x128xf32>
    %291 = arith.addf %288, %290 : vector<12x128xf32>
    %cst_11 = arith.constant 0.000000e+00 : f32
    %292 = vector.broadcast %cst_11 : f32 to vector<12x128xf32>
    %293 = arith.maximumf %291, %292 : vector<12x128xf32>
    %294 = vector.shape_cast %293 : vector<12x128xf32> to vector<6x2x128xf32>
    %cst_12 = arith.constant dense<0xFF800000> : vector<6x128xf32>
    %295 = vector.multi_reduction <maximumf>, %294, %cst_12 [1] : vector<6x2x128xf32> to vector<6x128xf32>
    %c64 = arith.constant 64 : index
    %296 = memref.load %arg3[%c64] : memref<121xf32, #tpu.memory_space<smem>>
    %297 = vector.broadcast %296 : f32 to vector<12x128xf32>
    %298 = arith.mulf %68, %297 : vector<12x128xf32>
    %c65 = arith.constant 65 : index
    %299 = memref.load %arg3[%c65] : memref<121xf32, #tpu.memory_space<smem>>
    %300 = vector.broadcast %299 : f32 to vector<12x128xf32>
    %301 = arith.mulf %69, %300 : vector<12x128xf32>
    %302 = arith.addf %298, %301 : vector<12x128xf32>
    %c66 = arith.constant 66 : index
    %303 = memref.load %arg3[%c66] : memref<121xf32, #tpu.memory_space<smem>>
    %304 = vector.broadcast %303 : f32 to vector<12x128xf32>
    %305 = arith.mulf %70, %304 : vector<12x128xf32>
    %306 = arith.addf %302, %305 : vector<12x128xf32>
    %c67 = arith.constant 67 : index
    %307 = memref.load %arg3[%c67] : memref<121xf32, #tpu.memory_space<smem>>
    %308 = vector.broadcast %307 : f32 to vector<12x128xf32>
    %309 = arith.mulf %71, %308 : vector<12x128xf32>
    %310 = arith.addf %306, %309 : vector<12x128xf32>
    %c68 = arith.constant 68 : index
    %311 = memref.load %arg3[%c68] : memref<121xf32, #tpu.memory_space<smem>>
    %312 = vector.broadcast %311 : f32 to vector<12x128xf32>
    %313 = arith.mulf %72, %312 : vector<12x128xf32>
    %314 = arith.addf %310, %313 : vector<12x128xf32>
    %c69 = arith.constant 69 : index
    %315 = memref.load %arg3[%c69] : memref<121xf32, #tpu.memory_space<smem>>
    %316 = vector.broadcast %315 : f32 to vector<12x128xf32>
    %317 = arith.mulf %73, %316 : vector<12x128xf32>
    %318 = arith.addf %314, %317 : vector<12x128xf32>
    %c70 = arith.constant 70 : index
    %319 = memref.load %arg3[%c70] : memref<121xf32, #tpu.memory_space<smem>>
    %320 = vector.broadcast %319 : f32 to vector<12x128xf32>
    %321 = arith.mulf %74, %320 : vector<12x128xf32>
    %322 = arith.addf %318, %321 : vector<12x128xf32>
    %c71 = arith.constant 71 : index
    %323 = memref.load %arg3[%c71] : memref<121xf32, #tpu.memory_space<smem>>
    %324 = vector.broadcast %323 : f32 to vector<12x128xf32>
    %325 = arith.mulf %75, %324 : vector<12x128xf32>
    %326 = arith.addf %322, %325 : vector<12x128xf32>
    %c72 = arith.constant 72 : index
    %327 = memref.load %arg3[%c72] : memref<121xf32, #tpu.memory_space<smem>>
    %328 = vector.broadcast %327 : f32 to vector<12x128xf32>
    %329 = arith.mulf %76, %328 : vector<12x128xf32>
    %330 = arith.addf %326, %329 : vector<12x128xf32>
    %c73 = arith.constant 73 : index
    %331 = memref.load %arg3[%c73] : memref<121xf32, #tpu.memory_space<smem>>
    %332 = vector.broadcast %331 : f32 to vector<12x128xf32>
    %333 = arith.mulf %77, %332 : vector<12x128xf32>
    %334 = arith.addf %330, %333 : vector<12x128xf32>
    %c74 = arith.constant 74 : index
    %335 = memref.load %arg3[%c74] : memref<121xf32, #tpu.memory_space<smem>>
    %336 = vector.broadcast %335 : f32 to vector<12x128xf32>
    %337 = arith.mulf %78, %336 : vector<12x128xf32>
    %338 = arith.addf %334, %337 : vector<12x128xf32>
    %c75 = arith.constant 75 : index
    %339 = memref.load %arg3[%c75] : memref<121xf32, #tpu.memory_space<smem>>
    %340 = vector.broadcast %339 : f32 to vector<12x128xf32>
    %341 = arith.mulf %79, %340 : vector<12x128xf32>
    %342 = arith.addf %338, %341 : vector<12x128xf32>
    %c116 = arith.constant 116 : index
    %343 = memref.load %arg3[%c116] : memref<121xf32, #tpu.memory_space<smem>>
    %344 = vector.broadcast %343 : f32 to vector<12x128xf32>
    %345 = arith.addf %342, %344 : vector<12x128xf32>
    %cst_13 = arith.constant 0.000000e+00 : f32
    %346 = vector.broadcast %cst_13 : f32 to vector<12x128xf32>
    %347 = arith.maximumf %345, %346 : vector<12x128xf32>
    %348 = vector.shape_cast %347 : vector<12x128xf32> to vector<6x2x128xf32>
    %cst_14 = arith.constant dense<0xFF800000> : vector<6x128xf32>
    %349 = vector.multi_reduction <maximumf>, %348, %cst_14 [1] : vector<6x2x128xf32> to vector<6x128xf32>
    %c76 = arith.constant 76 : index
    %350 = memref.load %arg3[%c76] : memref<121xf32, #tpu.memory_space<smem>>
    %351 = vector.broadcast %350 : f32 to vector<12x128xf32>
    %352 = arith.mulf %68, %351 : vector<12x128xf32>
    %c77 = arith.constant 77 : index
    %353 = memref.load %arg3[%c77] : memref<121xf32, #tpu.memory_space<smem>>
    %354 = vector.broadcast %353 : f32 to vector<12x128xf32>
    %355 = arith.mulf %69, %354 : vector<12x128xf32>
    %356 = arith.addf %352, %355 : vector<12x128xf32>
    %c78 = arith.constant 78 : index
    %357 = memref.load %arg3[%c78] : memref<121xf32, #tpu.memory_space<smem>>
    %358 = vector.broadcast %357 : f32 to vector<12x128xf32>
    %359 = arith.mulf %70, %358 : vector<12x128xf32>
    %360 = arith.addf %356, %359 : vector<12x128xf32>
    %c79 = arith.constant 79 : index
    %361 = memref.load %arg3[%c79] : memref<121xf32, #tpu.memory_space<smem>>
    %362 = vector.broadcast %361 : f32 to vector<12x128xf32>
    %363 = arith.mulf %71, %362 : vector<12x128xf32>
    %364 = arith.addf %360, %363 : vector<12x128xf32>
    %c80 = arith.constant 80 : index
    %365 = memref.load %arg3[%c80] : memref<121xf32, #tpu.memory_space<smem>>
    %366 = vector.broadcast %365 : f32 to vector<12x128xf32>
    %367 = arith.mulf %72, %366 : vector<12x128xf32>
    %368 = arith.addf %364, %367 : vector<12x128xf32>
    %c81 = arith.constant 81 : index
    %369 = memref.load %arg3[%c81] : memref<121xf32, #tpu.memory_space<smem>>
    %370 = vector.broadcast %369 : f32 to vector<12x128xf32>
    %371 = arith.mulf %73, %370 : vector<12x128xf32>
    %372 = arith.addf %368, %371 : vector<12x128xf32>
    %c82 = arith.constant 82 : index
    %373 = memref.load %arg3[%c82] : memref<121xf32, #tpu.memory_space<smem>>
    %374 = vector.broadcast %373 : f32 to vector<12x128xf32>
    %375 = arith.mulf %74, %374 : vector<12x128xf32>
    %376 = arith.addf %372, %375 : vector<12x128xf32>
    %c83 = arith.constant 83 : index
    %377 = memref.load %arg3[%c83] : memref<121xf32, #tpu.memory_space<smem>>
    %378 = vector.broadcast %377 : f32 to vector<12x128xf32>
    %379 = arith.mulf %75, %378 : vector<12x128xf32>
    %380 = arith.addf %376, %379 : vector<12x128xf32>
    %c84 = arith.constant 84 : index
    %381 = memref.load %arg3[%c84] : memref<121xf32, #tpu.memory_space<smem>>
    %382 = vector.broadcast %381 : f32 to vector<12x128xf32>
    %383 = arith.mulf %76, %382 : vector<12x128xf32>
    %384 = arith.addf %380, %383 : vector<12x128xf32>
    %c85 = arith.constant 85 : index
    %385 = memref.load %arg3[%c85] : memref<121xf32, #tpu.memory_space<smem>>
    %386 = vector.broadcast %385 : f32 to vector<12x128xf32>
    %387 = arith.mulf %77, %386 : vector<12x128xf32>
    %388 = arith.addf %384, %387 : vector<12x128xf32>
    %c86 = arith.constant 86 : index
    %389 = memref.load %arg3[%c86] : memref<121xf32, #tpu.memory_space<smem>>
    %390 = vector.broadcast %389 : f32 to vector<12x128xf32>
    %391 = arith.mulf %78, %390 : vector<12x128xf32>
    %392 = arith.addf %388, %391 : vector<12x128xf32>
    %c87 = arith.constant 87 : index
    %393 = memref.load %arg3[%c87] : memref<121xf32, #tpu.memory_space<smem>>
    %394 = vector.broadcast %393 : f32 to vector<12x128xf32>
    %395 = arith.mulf %79, %394 : vector<12x128xf32>
    %396 = arith.addf %392, %395 : vector<12x128xf32>
    %c117 = arith.constant 117 : index
    %397 = memref.load %arg3[%c117] : memref<121xf32, #tpu.memory_space<smem>>
    %398 = vector.broadcast %397 : f32 to vector<12x128xf32>
    %399 = arith.addf %396, %398 : vector<12x128xf32>
    %cst_15 = arith.constant 0.000000e+00 : f32
    %400 = vector.broadcast %cst_15 : f32 to vector<12x128xf32>
    %401 = arith.maximumf %399, %400 : vector<12x128xf32>
    %402 = vector.shape_cast %401 : vector<12x128xf32> to vector<6x2x128xf32>
    %cst_16 = arith.constant dense<0xFF800000> : vector<6x128xf32>
    %403 = vector.multi_reduction <maximumf>, %402, %cst_16 [1] : vector<6x2x128xf32> to vector<6x128xf32>
    %c88 = arith.constant 88 : index
    %404 = memref.load %arg3[%c88] : memref<121xf32, #tpu.memory_space<smem>>
    %405 = vector.broadcast %404 : f32 to vector<12x128xf32>
    %406 = arith.mulf %68, %405 : vector<12x128xf32>
    %c89 = arith.constant 89 : index
    %407 = memref.load %arg3[%c89] : memref<121xf32, #tpu.memory_space<smem>>
    %408 = vector.broadcast %407 : f32 to vector<12x128xf32>
    %409 = arith.mulf %69, %408 : vector<12x128xf32>
    %410 = arith.addf %406, %409 : vector<12x128xf32>
    %c90 = arith.constant 90 : index
    %411 = memref.load %arg3[%c90] : memref<121xf32, #tpu.memory_space<smem>>
    %412 = vector.broadcast %411 : f32 to vector<12x128xf32>
    %413 = arith.mulf %70, %412 : vector<12x128xf32>
    %414 = arith.addf %410, %413 : vector<12x128xf32>
    %c91 = arith.constant 91 : index
    %415 = memref.load %arg3[%c91] : memref<121xf32, #tpu.memory_space<smem>>
    %416 = vector.broadcast %415 : f32 to vector<12x128xf32>
    %417 = arith.mulf %71, %416 : vector<12x128xf32>
    %418 = arith.addf %414, %417 : vector<12x128xf32>
    %c92 = arith.constant 92 : index
    %419 = memref.load %arg3[%c92] : memref<121xf32, #tpu.memory_space<smem>>
    %420 = vector.broadcast %419 : f32 to vector<12x128xf32>
    %421 = arith.mulf %72, %420 : vector<12x128xf32>
    %422 = arith.addf %418, %421 : vector<12x128xf32>
    %c93 = arith.constant 93 : index
    %423 = memref.load %arg3[%c93] : memref<121xf32, #tpu.memory_space<smem>>
    %424 = vector.broadcast %423 : f32 to vector<12x128xf32>
    %425 = arith.mulf %73, %424 : vector<12x128xf32>
    %426 = arith.addf %422, %425 : vector<12x128xf32>
    %c94 = arith.constant 94 : index
    %427 = memref.load %arg3[%c94] : memref<121xf32, #tpu.memory_space<smem>>
    %428 = vector.broadcast %427 : f32 to vector<12x128xf32>
    %429 = arith.mulf %74, %428 : vector<12x128xf32>
    %430 = arith.addf %426, %429 : vector<12x128xf32>
    %c95 = arith.constant 95 : index
    %431 = memref.load %arg3[%c95] : memref<121xf32, #tpu.memory_space<smem>>
    %432 = vector.broadcast %431 : f32 to vector<12x128xf32>
    %433 = arith.mulf %75, %432 : vector<12x128xf32>
    %434 = arith.addf %430, %433 : vector<12x128xf32>
    %c96 = arith.constant 96 : index
    %435 = memref.load %arg3[%c96] : memref<121xf32, #tpu.memory_space<smem>>
    %436 = vector.broadcast %435 : f32 to vector<12x128xf32>
    %437 = arith.mulf %76, %436 : vector<12x128xf32>
    %438 = arith.addf %434, %437 : vector<12x128xf32>
    %c97 = arith.constant 97 : index
    %439 = memref.load %arg3[%c97] : memref<121xf32, #tpu.memory_space<smem>>
    %440 = vector.broadcast %439 : f32 to vector<12x128xf32>
    %441 = arith.mulf %77, %440 : vector<12x128xf32>
    %442 = arith.addf %438, %441 : vector<12x128xf32>
    %c98 = arith.constant 98 : index
    %443 = memref.load %arg3[%c98] : memref<121xf32, #tpu.memory_space<smem>>
    %444 = vector.broadcast %443 : f32 to vector<12x128xf32>
    %445 = arith.mulf %78, %444 : vector<12x128xf32>
    %446 = arith.addf %442, %445 : vector<12x128xf32>
    %c99 = arith.constant 99 : index
    %447 = memref.load %arg3[%c99] : memref<121xf32, #tpu.memory_space<smem>>
    %448 = vector.broadcast %447 : f32 to vector<12x128xf32>
    %449 = arith.mulf %79, %448 : vector<12x128xf32>
    %450 = arith.addf %446, %449 : vector<12x128xf32>
    %c118 = arith.constant 118 : index
    %451 = memref.load %arg3[%c118] : memref<121xf32, #tpu.memory_space<smem>>
    %452 = vector.broadcast %451 : f32 to vector<12x128xf32>
    %453 = arith.addf %450, %452 : vector<12x128xf32>
    %cst_17 = arith.constant 0.000000e+00 : f32
    %454 = vector.broadcast %cst_17 : f32 to vector<12x128xf32>
    %455 = arith.maximumf %453, %454 : vector<12x128xf32>
    %456 = vector.shape_cast %455 : vector<12x128xf32> to vector<6x2x128xf32>
    %cst_18 = arith.constant dense<0xFF800000> : vector<6x128xf32>
    %457 = vector.multi_reduction <maximumf>, %456, %cst_18 [1] : vector<6x2x128xf32> to vector<6x128xf32>
    %c100 = arith.constant 100 : index
    %458 = memref.load %arg3[%c100] : memref<121xf32, #tpu.memory_space<smem>>
    %459 = vector.broadcast %458 : f32 to vector<12x128xf32>
    %460 = arith.mulf %68, %459 : vector<12x128xf32>
    %c101 = arith.constant 101 : index
    %461 = memref.load %arg3[%c101] : memref<121xf32, #tpu.memory_space<smem>>
    %462 = vector.broadcast %461 : f32 to vector<12x128xf32>
    %463 = arith.mulf %69, %462 : vector<12x128xf32>
    %464 = arith.addf %460, %463 : vector<12x128xf32>
    %c102 = arith.constant 102 : index
    %465 = memref.load %arg3[%c102] : memref<121xf32, #tpu.memory_space<smem>>
    %466 = vector.broadcast %465 : f32 to vector<12x128xf32>
    %467 = arith.mulf %70, %466 : vector<12x128xf32>
    %468 = arith.addf %464, %467 : vector<12x128xf32>
    %c103 = arith.constant 103 : index
    %469 = memref.load %arg3[%c103] : memref<121xf32, #tpu.memory_space<smem>>
    %470 = vector.broadcast %469 : f32 to vector<12x128xf32>
    %471 = arith.mulf %71, %470 : vector<12x128xf32>
    %472 = arith.addf %468, %471 : vector<12x128xf32>
    %c104 = arith.constant 104 : index
    %473 = memref.load %arg3[%c104] : memref<121xf32, #tpu.memory_space<smem>>
    %474 = vector.broadcast %473 : f32 to vector<12x128xf32>
    %475 = arith.mulf %72, %474 : vector<12x128xf32>
    %476 = arith.addf %472, %475 : vector<12x128xf32>
    %c105 = arith.constant 105 : index
    %477 = memref.load %arg3[%c105] : memref<121xf32, #tpu.memory_space<smem>>
    %478 = vector.broadcast %477 : f32 to vector<12x128xf32>
    %479 = arith.mulf %73, %478 : vector<12x128xf32>
    %480 = arith.addf %476, %479 : vector<12x128xf32>
    %c106 = arith.constant 106 : index
    %481 = memref.load %arg3[%c106] : memref<121xf32, #tpu.memory_space<smem>>
    %482 = vector.broadcast %481 : f32 to vector<12x128xf32>
    %483 = arith.mulf %74, %482 : vector<12x128xf32>
    %484 = arith.addf %480, %483 : vector<12x128xf32>
    %c107 = arith.constant 107 : index
    %485 = memref.load %arg3[%c107] : memref<121xf32, #tpu.memory_space<smem>>
    %486 = vector.broadcast %485 : f32 to vector<12x128xf32>
    %487 = arith.mulf %75, %486 : vector<12x128xf32>
    %488 = arith.addf %484, %487 : vector<12x128xf32>
    %c108 = arith.constant 108 : index
    %489 = memref.load %arg3[%c108] : memref<121xf32, #tpu.memory_space<smem>>
    %490 = vector.broadcast %489 : f32 to vector<12x128xf32>
    %491 = arith.mulf %76, %490 : vector<12x128xf32>
    %492 = arith.addf %488, %491 : vector<12x128xf32>
    %c109 = arith.constant 109 : index
    %493 = memref.load %arg3[%c109] : memref<121xf32, #tpu.memory_space<smem>>
    %494 = vector.broadcast %493 : f32 to vector<12x128xf32>
    %495 = arith.mulf %77, %494 : vector<12x128xf32>
    %496 = arith.addf %492, %495 : vector<12x128xf32>
    %c110 = arith.constant 110 : index
    %497 = memref.load %arg3[%c110] : memref<121xf32, #tpu.memory_space<smem>>
    %498 = vector.broadcast %497 : f32 to vector<12x128xf32>
    %499 = arith.mulf %78, %498 : vector<12x128xf32>
    %500 = arith.addf %496, %499 : vector<12x128xf32>
    %c111 = arith.constant 111 : index
    %501 = memref.load %arg3[%c111] : memref<121xf32, #tpu.memory_space<smem>>
    %502 = vector.broadcast %501 : f32 to vector<12x128xf32>
    %503 = arith.mulf %79, %502 : vector<12x128xf32>
    %504 = arith.addf %500, %503 : vector<12x128xf32>
    %c119 = arith.constant 119 : index
    %505 = memref.load %arg3[%c119] : memref<121xf32, #tpu.memory_space<smem>>
    %506 = vector.broadcast %505 : f32 to vector<12x128xf32>
    %507 = arith.addf %504, %506 : vector<12x128xf32>
    %cst_19 = arith.constant 0.000000e+00 : f32
    %508 = vector.broadcast %cst_19 : f32 to vector<12x128xf32>
    %509 = arith.maximumf %507, %508 : vector<12x128xf32>
    %510 = vector.shape_cast %509 : vector<12x128xf32> to vector<6x2x128xf32>
    %cst_20 = arith.constant dense<0xFF800000> : vector<6x128xf32>
    %511 = vector.multi_reduction <maximumf>, %510, %cst_20 [1] : vector<6x2x128xf32> to vector<6x128xf32>
    %512 = tpu.concatenate %133, %187, %241, %295, %349, %403, %457, %511 in 0 : vector<6x128xf32>, vector<6x128xf32>, vector<6x128xf32>, vector<6x128xf32>, vector<6x128xf32>, vector<6x128xf32>, vector<6x128xf32>, vector<6x128xf32> -> vector<48x128xf32>
    %c0_21 = arith.constant 0 : index
    %c0_22 = arith.constant 0 : index
    %513 = vector.load %arg2[%c0_21, %c0_22] : memref<32x50xf32, #tpu.memory_space<vmem>>, vector<32x50xf32>
    %514 = vector.extract_strided_slice %513 {offsets = [0, 0], sizes = [32, 48], strides = [1, 1]} : vector<32x50xf32> to vector<32x48xf32>
    %515 = vector.extract_strided_slice %513 {offsets = [0, 48], sizes = [32, 1], strides = [1, 1]} : vector<32x50xf32> to vector<32x1xf32>
    %516 = vector.extract_strided_slice %513 {offsets = [0, 49], sizes = [32, 1], strides = [1, 1]} : vector<32x50xf32> to vector<32x1xf32>
    %cst_23 = arith.constant dense<0.000000e+00> : vector<32x128xf32>
    %517 = tpu.matmul %514, %512, %cst_23 {dimension_numbers = #tpu.dot_dimension_numbers<[1], [0], [0], [1], [0, 0, 1, 1], [], []>} : vector<32x48xf32>, vector<48x128xf32>, vector<32x128xf32> -> vector<32x128xf32>
    %518 = vector.broadcast %515 : vector<32x1xf32> to vector<32x128xf32>
    %519 = arith.addf %517, %518 : vector<32x128xf32>
    %cst_24 = arith.constant 0.000000e+00 : f32
    %520 = vector.broadcast %cst_24 : f32 to vector<32x128xf32>
    %521 = arith.maximumf %519, %520 : vector<32x128xf32>
    %522 = vector.broadcast %516 : vector<32x1xf32> to vector<32x128xf32>
    %523 = arith.mulf %521, %522 : vector<32x128xf32>
    %cst_25 = arith.constant dense<0.000000e+00> : vector<128xf32>
    %524 = vector.multi_reduction <add>, %523, %cst_25 [0] : vector<32x128xf32> to vector<128xf32>
    %525 = vector.shape_cast %524 : vector<128xf32> to vector<1x128xf32>
    %c120 = arith.constant 120 : index
    %526 = memref.load %arg3[%c120] : memref<121xf32, #tpu.memory_space<smem>>
    %527 = vector.broadcast %526 : f32 to vector<1x128xf32>
    %528 = arith.addf %525, %527 : vector<1x128xf32>
    %529 = math.absf %528 : vector<1x128xf32>
    %cst_26 = arith.constant 0.000000e+00 : f32
    %530 = vector.broadcast %cst_26 : f32 to vector<1x128xf32>
    %531 = arith.subf %530, %529 : vector<1x128xf32>
    %532 = math.exp %531 : vector<1x128xf32>
    %cst_27 = arith.constant 0.000000e+00 : f32
    %533 = vector.broadcast %cst_27 : f32 to vector<1x128xf32>
    %534 = arith.cmpf oge, %528, %533 : vector<1x128xf32>
    %cst_28 = arith.constant 1.000000e+00 : f32
    %535 = vector.broadcast %cst_28 : f32 to vector<1x128xf32>
    %536 = arith.addf %535, %532 : vector<1x128xf32>
    %cst_29 = arith.constant 1.000000e+00 : f32
    %537 = vector.broadcast %cst_29 : f32 to vector<1x128xf32>
    %538 = arith.divf %537, %536 : vector<1x128xf32>
    %cst_30 = arith.constant 1.000000e+00 : f32
    %539 = vector.broadcast %cst_30 : f32 to vector<1x128xf32>
    %540 = arith.addf %539, %532 : vector<1x128xf32>
    %541 = arith.divf %532, %540 : vector<1x128xf32>
    %542 = arith.select %534, %538, %541 : vector<1x128xi1>, vector<1x128xf32>
    %c0_31 = arith.constant 0 : index
    %c0_32 = arith.constant 0 : index
    %543 = vector.load %arg4[%c0_31, %c0_32] : memref<1x128xf32, #tpu.memory_space<vmem>>, vector<1x128xf32>
    tpu.vector_store %arg4[%c0_31, %c0_32], %542 {strides = array<i32>} : memref<1x128xf32, #tpu.memory_space<vmem>>, vector<1x128xf32>,
    return
  }
  func.func @transform_0(%arg0: i32) -> (i32, i32) {
    %c0_i32 = arith.constant 0 : i32
    %c0_i32_0 = arith.constant 0 : i32
    return %c0_i32, %arg0 : i32, i32
  }
  func.func @transform_1(%arg0: i32) -> (i32, i32) {
    %c0_i32 = arith.constant 0 : i32
    %c0_i32_0 = arith.constant 0 : i32
    %c0_i32_1 = arith.constant 0 : i32
    return %c0_i32, %c0_i32_0 : i32, i32
  }
  func.func @transform_2(%arg0: i32) -> i32 {
    %c0_i32 = arith.constant 0 : i32
    %c0_i32_0 = arith.constant 0 : i32
    return %c0_i32 : i32
  }
  func.func @transform_3(%arg0: i32) -> (i32, i32) {
    %c0_i32 = arith.constant 0 : i32
    %c0_i32_0 = arith.constant 0 : i32
    return %c0_i32, %arg0 : i32, i32
  }
}

</mosaic_0001>

<llo_original>
// kernel: tpu_custom_call.1
$region0: #{tpu_custom_call.1}
  #allocation0 [shape = 'u32[]', space=smem, size = 0x4, offset = 0x4, fixed_abs, tag = 'smem constant byte address 0x4 - core index']
  #allocation1 [shape = 'u32[72,128]{1,0:T(1,128)}', space=vmem, size = 0x9000, scoped, tag = 'internal scratch']
  %s0 = inlined_call_operand.hbm [shape: f32[16,128], index: 0, kind: input, shape index: {}]
  %s1 = inlined_call_operand.hbm [shape: f32[32,50], index: 1, kind: input, shape index: {}]
  %s2 = inlined_call_operand.vmem [shape: f32[121], index: 2, kind: input, shape index: {}]
  %s3 = inlined_call_operand.hbm [shape: f32[1,128], index: 3, kind: output, shape index: {}]
  %s4 = sld [smem:[#allocation0]]
  $region34: #{tpu_custom_call.1} parent=0
    _
  %s6 = ssub.s32 1, %s4
  %s7 = scalar_select 0, %s6, %s4
  $region1: #{tpu_custom_call.1} parent=0
    #allocation2 [shape = 'u8[8192]{0}', space=vmem, size = 0x2000, scoped, tag = 'input window, operand 0, single buffered']
    #allocation3 [shape = 's32[1]{0}', space=sflag, size = 0x4, scoped, tag = 'scoped memory for tpu_custom_call.1']
    #allocation4 [shape = 's32[1]{0}', space=sflag, size = 0x4, scoped, tag = 'scoped memory for tpu_custom_call.1']
    #allocation5 [shape = 's32[1]{0}', space=sflag, size = 0x4, scoped, tag = 'scoped memory for tpu_custom_call.1']
    #allocation6 [shape = 'u8[16384]{0}', space=vmem, size = 0x4000, scoped, tag = 'input window, operand 1, single buffered']
    #allocation7 [shape = 's32[1]{0}', space=sflag, size = 0x4, scoped, tag = 'scoped memory for tpu_custom_call.1']
    #allocation8 [shape = 'u8[512]{0}', space=smem, size = 0x200, scoped, tag = 'input window, operand 2, single buffered']
    #allocation9 [shape = 'u8[512]{0}', space=vmem, size = 0x400, scoped, tag = 'output window, operand 0, single buffered']
    %8 = vsyncpa [#allocation3], 0
    %9 = vsyncpa [#allocation7], 0
    %10 = vsyncpa [#allocation5], 0
    %11 = vsyncpa [#allocation4], 0
    // Predicated region
    $region2: #{tpu_custom_call.1} parent=1 // pred_check
      _
    $region3: #{tpu_custom_call.1} parent=1 // pred_check_branch
      %13 = sbr.rel (0) target = $region5
    $region4: #{tpu_custom_call.1} parent=1 // pred_region
      %15 = vsyncadd [#allocation3], 0
      %s16 = sshll.u32 %s0, 4
      %s17 = int_to_ptr.hbm [resolvable:$true] %s16
      %s18 = sshll.u32 [#allocation2], 4
      %s19 = int_to_ptr.vmem [resolvable:$true] %s18
      %24 = dma.hbm_to_vmem [thread:$0]  %s17, 256, %s19, [#allocation3], 128, 128, 8
    $region5: #{tpu_custom_call.1} parent=1 // pred_fallthru
      _
    // Predicated region
    $region6: #{tpu_custom_call.1} parent=1 // pred_check
      _
    $region7: #{tpu_custom_call.1} parent=1 // pred_check_branch
      %26 = sbr.rel (0) target = $region9
    $region8: #{tpu_custom_call.1} parent=1 // pred_region
      %28 = vsyncadd [#allocation7], 0
      %s29 = sshll.u32 %s1, 4
      %s30 = int_to_ptr.hbm [resolvable:$true] %s29
      %s31 = sshll.u32 [#allocation6], 4
      %s32 = int_to_ptr.vmem [resolvable:$true] %s31
      %37 = dma.hbm_to_vmem [thread:$0]  %s30, 512, %s32, [#allocation7], 128, 128, 8
    $region9: #{tpu_custom_call.1} parent=1 // pred_fallthru
      _
    // Predicated region
    $region10: #{tpu_custom_call.1} parent=1 // pred_check
      _
    $region11: #{tpu_custom_call.1} parent=1 // pred_check_branch
      %39 = sbr.rel (0) target = $region13
    $region12: #{tpu_custom_call.1} parent=1 // pred_region
      %41 = vsyncadd [#allocation5], 0
      %s43 = sshll.u32 %s2, 4
      %s44 = int_to_ptr.vmem [resolvable:$true] %s43
      %46 = dma.vmem_to_smem %s44, 16, [#allocation8], [#allocation5]
    $region13: #{tpu_custom_call.1} parent=1 // pred_fallthru
      _
    // Predicated region
    $region14: #{tpu_custom_call.1} parent=1 // pred_check
      _
    $region15: #{tpu_custom_call.1} parent=1 // pred_check_branch
      %48 = sbr.rel (0) target = $region17
    $region16: #{tpu_custom_call.1} parent=1 // pred_region
      %50 = dma.done [#allocation3], 256
    $region17: #{tpu_custom_call.1} parent=1 // pred_fallthru
      _
    // Predicated region
    $region18: #{tpu_custom_call.1} parent=1 // pred_check
      _
    $region19: #{tpu_custom_call.1} parent=1 // pred_check_branch
      %52 = sbr.rel (0) target = $region21
    $region20: #{tpu_custom_call.1} parent=1 // pred_region
      %54 = dma.done [#allocation7], 512
    $region21: #{tpu_custom_call.1} parent=1 // pred_fallthru
      _
    // Predicated region
    $region22: #{tpu_custom_call.1} parent=1 // pred_check
      _
    $region23: #{tpu_custom_call.1} parent=1 // pred_check_branch
      %56 = sbr.rel (0) target = $region25
    $region24: #{tpu_custom_call.1} parent=1 // pred_region
      %58 = dma.done [#allocation5], 16
    $region25: #{tpu_custom_call.1} parent=1 // pred_fallthru
      _
    %59 = sfence
    %v60 = vld [vmem:[#allocation2] sm:$0xff]
    %v61 = vld [vmem:[#allocation2 + $0x8] sm:$0xff]
    %s62 = sld [smem:[#allocation8]]
    %v63 = vstv %s62
    %v64 = vmul.f32 %v60, %v63
    %v65 = vmul.f32 %v61, %v63
    %s66 = sld [smem:[#allocation8 + $0x1]]
    %v67 = vstv %s66
    %v68 = vmul.f32 %v60, %v67
    %v69 = vmul.f32 %v61, %v67
    %vm72 = vcmask 1046528
    %v73 = vrot.slane %v68, 1
    %v74 = vrot.slane %v69, 1
    %v75 = vsel %vm72, %v73, %v74
    %v78 = vadd.f32 %v64, %v75
    %v79 = vadd.f32 %v65, %v74
    %s80 = sld [smem:[#allocation8 + $0x2]]
    %v81 = vstv %s80
    %v82 = vmul.f32 %v60, %v81
    %v83 = vmul.f32 %v61, %v81
    %vm86 = vcmask 1045504
    %v87 = vrot.slane %v82, 2
    %v88 = vrot.slane %v83, 2
    %v89 = vsel %vm86, %v87, %v88
    %v92 = vadd.f32 %v78, %v89
    %v93 = vadd.f32 %v79, %v88
    %s94 = sld [smem:[#allocation8 + $0xc]]
    %v95 = vstv %s94
    %v96 = vadd.f32 %v92, %v95
    %v97 = vadd.f32 %v93, %v95
    %v98 = vmax.f32 %v96, 0.0
    %v99 = vmax.f32 %v97, 0.0
    %s100 = sld [smem:[#allocation8 + $0x3]]
    %v101 = vstv %s100
    %v102 = vmul.f32 %v60, %v101
    %v103 = vmul.f32 %v61, %v101
    %s104 = sld [smem:[#allocation8 + $0x4]]
    %v105 = vstv %s104
    %v106 = vmul.f32 %v60, %v105
    %v107 = vmul.f32 %v61, %v105
    %v110 = vrot.slane %v106, 1
    %v111 = vrot.slane %v107, 1
    %v112 = vsel %vm72, %v110, %v111
    %v115 = vadd.f32 %v102, %v112
    %v116 = vadd.f32 %v103, %v111
    %s117 = sld [smem:[#allocation8 + $0x5]]
    %v118 = vstv %s117
    %v119 = vmul.f32 %v60, %v118
    %v120 = vmul.f32 %v61, %v118
    %v123 = vrot.slane %v119, 2
    %v124 = vrot.slane %v120, 2
    %v125 = vsel %vm86, %v123, %v124
    %v128 = vadd.f32 %v115, %v125
    %v129 = vadd.f32 %v116, %v124
    %s130 = sld [smem:[#allocation8 + $0xd]]
    %v131 = vstv %s130
    %v132 = vadd.f32 %v128, %v131
    %v133 = vadd.f32 %v129, %v131
    %v134 = vmax.f32 %v132, 0.0
    %v135 = vmax.f32 %v133, 0.0
    %s136 = sld [smem:[#allocation8 + $0x6]]
    %v137 = vstv %s136
    %v138 = vmul.f32 %v60, %v137
    %v139 = vmul.f32 %v61, %v137
    %s140 = sld [smem:[#allocation8 + $0x7]]
    %v141 = vstv %s140
    %v142 = vmul.f32 %v60, %v141
    %v143 = vmul.f32 %v61, %v141
    %v146 = vrot.slane %v142, 1
    %v147 = vrot.slane %v143, 1
    %v148 = vsel %vm72, %v146, %v147
    %v151 = vadd.f32 %v138, %v148
    %v152 = vadd.f32 %v139, %v147
    %s153 = sld [smem:[#allocation8 + $0x8]]
    %v154 = vstv %s153
    %v155 = vmul.f32 %v60, %v154
    %v156 = vmul.f32 %v61, %v154
    %v159 = vrot.slane %v155, 2
    %v160 = vrot.slane %v156, 2
    %v161 = vsel %vm86, %v159, %v160
    %v164 = vadd.f32 %v151, %v161
    %v165 = vadd.f32 %v152, %v160
    %s166 = sld [smem:[#allocation8 + $0xe]]
    %v167 = vstv %s166
    %v168 = vadd.f32 %v164, %v167
    %v169 = vadd.f32 %v165, %v167
    %v170 = vmax.f32 %v168, 0.0
    %v171 = vmax.f32 %v169, 0.0
    %s172 = sld [smem:[#allocation8 + $0x9]]
    %v173 = vstv %s172
    %v174 = vmul.f32 %v60, %v173
    %v175 = vmul.f32 %v61, %v173
    %s176 = sld [smem:[#allocation8 + $0xa]]
    %v177 = vstv %s176
    %v178 = vmul.f32 %v60, %v177
    %v179 = vmul.f32 %v61, %v177
    %v182 = vrot.slane %v178, 1
    %v183 = vrot.slane %v179, 1
    %v184 = vsel %vm72, %v182, %v183
    %v187 = vadd.f32 %v174, %v184
    %v188 = vadd.f32 %v175, %v183
    %s189 = sld [smem:[#allocation8 + $0xb]]
    %v190 = vstv %s189
    %v191 = vmul.f32 %v60, %v190
    %v192 = vmul.f32 %v61, %v190
    %v195 = vrot.slane %v191, 2
    %v196 = vrot.slane %v192, 2
    %v197 = vsel %vm86, %v195, %v196
    %v200 = vadd.f32 %v187, %v197
    %v201 = vadd.f32 %v188, %v196
    %s202 = sld [smem:[#allocation8 + $0xf]]
    %v203 = vstv %s202
    %v204 = vadd.f32 %v200, %v203
    %v205 = vadd.f32 %v201, %v203
    %v206 = vmax.f32 %v204, 0.0
    %v207 = vmax.f32 %v205, 0.0
    %s208 = sld [smem:[#allocation8 + $0x10]]
    %v209 = vstv %s208
    %v210 = vmul.f32 %v98, %v209
    %v211 = vmul.f32 %v99, %v209
    %s212 = sld [smem:[#allocation8 + $0x11]]
    %v213 = vstv %s212
    %v214 = vmul.f32 %v98, %v213
    %v215 = vmul.f32 %v99, %v213
    %v218 = vrot.slane %v214, 1
    %v219 = vrot.slane %v215, 1
    %v220 = vsel %vm72, %v218, %v219
    %v223 = vadd.f32 %v210, %v220
    %v224 = vadd.f32 %v211, %v219
    %s225 = sld [smem:[#allocation8 + $0x12]]
    %v226 = vstv %s225
    %v227 = vmul.f32 %v98, %v226
    %v228 = vmul.f32 %v99, %v226
    %v231 = vrot.slane %v227, 2
    %v232 = vrot.slane %v228, 2
    %v233 = vsel %vm86, %v231, %v232
    %v236 = vadd.f32 %v223, %v233
    %v237 = vadd.f32 %v224, %v232
    %s238 = sld [smem:[#allocation8 + $0x13]]
    %v239 = vstv %s238
    %v240 = vmul.f32 %v134, %v239
    %v241 = vmul.f32 %v135, %v239
    %v242 = vadd.f32 %v236, %v240
    %v243 = vadd.f32 %v237, %v241
    %s244 = sld [smem:[#allocation8 + $0x14]]
    %v245 = vstv %s244
    %v246 = vmul.f32 %v134, %v245
    %v247 = vmul.f32 %v135, %v245
    %v250 = vrot.slane %v246, 1
    %v251 = vrot.slane %v247, 1
    %v252 = vsel %vm72, %v250, %v251
    %v255 = vadd.f32 %v242, %v252
    %v256 = vadd.f32 %v243, %v251
    %s257 = sld [smem:[#allocation8 + $0x15]]
    %v258 = vstv %s257
    %v259 = vmul.f32 %v134, %v258
    %v260 = vmul.f32 %v135, %v258
    %v263 = vrot.slane %v259, 2
    %v264 = vrot.slane %v260, 2
    %v265 = vsel %vm86, %v263, %v264
    %v268 = vadd.f32 %v255, %v265
    %v269 = vadd.f32 %v256, %v264
    %s270 = sld [smem:[#allocation8 + $0x16]]
    %v271 = vstv %s270
    %v272 = vmul.f32 %v170, %v271
    %v273 = vmul.f32 %v171, %v271
    %v274 = vadd.f32 %v268, %v272
    %v275 = vadd.f32 %v269, %v273
    %s276 = sld [smem:[#allocation8 + $0x17]]
    %v277 = vstv %s276
    %v278 = vmul.f32 %v170, %v277
    %v279 = vmul.f32 %v171, %v277
    %v282 = vrot.slane %v278, 1
    %v283 = vrot.slane %v279, 1
    %v284 = vsel %vm72, %v282, %v283
    %v287 = vadd.f32 %v274, %v284
    %v288 = vadd.f32 %v275, %v283
    %s289 = sld [smem:[#allocation8 + $0x18]]
    %v290 = vstv %s289
    %v291 = vmul.f32 %v170, %v290
    %v292 = vmul.f32 %v171, %v290
    %v295 = vrot.slane %v291, 2
    %v296 = vrot.slane %v292, 2
    %v297 = vsel %vm86, %v295, %v296
    %v300 = vadd.f32 %v287, %v297
    %v301 = vadd.f32 %v288, %v296
    %s302 = sld [smem:[#allocation8 + $0x19]]
    %v303 = vstv %s302
    %v304 = vmul.f32 %v206, %v303
    %v305 = vmul.f32 %v207, %v303
    %v306 = vadd.f32 %v300, %v304
    %v307 = vadd.f32 %v301, %v305
    %s308 = sld [smem:[#allocation8 + $0x1a]]
    %v309 = vstv %s308
    %v310 = vmul.f32 %v206, %v309
    %v311 = vmul.f32 %v207, %v309
    %v314 = vrot.slane %v310, 1
    %v315 = vrot.slane %v311, 1
    %v316 = vsel %vm72, %v314, %v315
    %v319 = vadd.f32 %v306, %v316
    %v320 = vadd.f32 %v307, %v315
    %s321 = sld [smem:[#allocation8 + $0x1b]]
    %v322 = vstv %s321
    %v323 = vmul.f32 %v206, %v322
    %v324 = vmul.f32 %v207, %v322
    %v327 = vrot.slane %v323, 2
    %v328 = vrot.slane %v324, 2
    %v329 = vsel %vm86, %v327, %v328
    %v332 = vadd.f32 %v319, %v329
    %v333 = vadd.f32 %v320, %v328
    %s334 = sld [smem:[#allocation8 + $0x70]]
    %v335 = vstv %s334
    %v336 = vadd.f32 %v332, %v335
    %v337 = vadd.f32 %v333, %v335
    %v338 = vmax.f32 %v336, 0.0
    %v339 = vmax.f32 %v337, 0.0
    %v342 = vrot.slane %v338, 2
    %v343 = vrot.slane %v338, 4
    %v344 = vrot.slane %v338, 6
    %v345 = vrot.slane %v339, 2
    %vm350 = vcmask 1041408
    %v351 = vsel %vm350, %v338, -inf
    %v352 = vrot.slane %v351, 4
    %v353 = vmax.f32 %v351, %v352
    %v354 = vrot.slane %v353, 2
    %v355 = vmax.f32 %v353, %v354
    %v356 = vrot.slane %v355, 1
    %v357 = vmax.f32 %v355, %v356
    %v358 = vsel %vm350, %v342, -inf
    %v359 = vrot.slane %v358, 4
    %v360 = vmax.f32 %v358, %v359
    %v361 = vrot.slane %v360, 2
    %v362 = vmax.f32 %v360, %v361
    %v363 = vrot.slane %v362, 1
    %v364 = vmax.f32 %v362, %v363
    %v365 = vsel %vm350, %v343, -inf
    %v366 = vrot.slane %v365, 4
    %v367 = vmax.f32 %v365, %v366
    %v368 = vrot.slane %v367, 2
    %v369 = vmax.f32 %v367, %v368
    %v370 = vrot.slane %v369, 1
    %v371 = vmax.f32 %v369, %v370
    %v372 = vsel %vm350, %v344, -inf
    %v373 = vrot.slane %v372, 4
    %v374 = vmax.f32 %v372, %v373
    %v375 = vrot.slane %v374, 2
    %v376 = vmax.f32 %v374, %v375
    %v377 = vrot.slane %v376, 1
    %v378 = vmax.f32 %v376, %v377
    %v379 = vsel %vm350, %v339, -inf
    %v380 = vrot.slane %v379, 4
    %v381 = vmax.f32 %v379, %v380
    %v382 = vrot.slane %v381, 2
    %v383 = vmax.f32 %v381, %v382
    %v384 = vrot.slane %v383, 1
    %v385 = vmax.f32 %v383, %v384
    %v386 = vsel %vm350, %v345, -inf
    %v387 = vrot.slane %v386, 4
    %v388 = vmax.f32 %v386, %v387
    %v389 = vrot.slane %v388, 2
    %v390 = vmax.f32 %v388, %v389
    %v391 = vrot.slane %v390, 1
    %v392 = vmax.f32 %v390, %v391
    %s393 = sld [smem:[#allocation8 + $0x1c]]
    %v394 = vstv %s393
    %v395 = vmul.f32 %v98, %v394
    %v396 = vmul.f32 %v99, %v394
    %s397 = sld [smem:[#allocation8 + $0x1d]]
    %v398 = vstv %s397
    %v399 = vmul.f32 %v98, %v398
    %v400 = vmul.f32 %v99, %v398
    %v403 = vrot.slane %v399, 1
    %v404 = vrot.slane %v400, 1
    %v405 = vsel %vm72, %v403, %v404
    %v408 = vadd.f32 %v395, %v405
    %v409 = vadd.f32 %v396, %v404
    %s410 = sld [smem:[#allocation8 + $0x1e]]
    %v411 = vstv %s410
    %v412 = vmul.f32 %v98, %v411
    %v413 = vmul.f32 %v99, %v411
    %v416 = vrot.slane %v412, 2
    %v417 = vrot.slane %v413, 2
    %v418 = vsel %vm86, %v416, %v417
    %v421 = vadd.f32 %v408, %v418
    %v422 = vadd.f32 %v409, %v417
    %s423 = sld [smem:[#allocation8 + $0x1f]]
    %v424 = vstv %s423
    %v425 = vmul.f32 %v134, %v424
    %v426 = vmul.f32 %v135, %v424
    %v427 = vadd.f32 %v421, %v425
    %v428 = vadd.f32 %v422, %v426
    %s429 = sld [smem:[#allocation8 + $0x20]]
    %v430 = vstv %s429
    %v431 = vmul.f32 %v134, %v430
    %v432 = vmul.f32 %v135, %v430
    %v435 = vrot.slane %v431, 1
    %v436 = vrot.slane %v432, 1
    %v437 = vsel %vm72, %v435, %v436
    %v440 = vadd.f32 %v427, %v437
    %v441 = vadd.f32 %v428, %v436
    %s442 = sld [smem:[#allocation8 + $0x21]]
    %v443 = vstv %s442
    %v444 = vmul.f32 %v134, %v443
    %v445 = vmul.f32 %v135, %v443
    %v448 = vrot.slane %v444, 2
    %v449 = vrot.slane %v445, 2
    %v450 = vsel %vm86, %v448, %v449
    %v453 = vadd.f32 %v440, %v450
    %v454 = vadd.f32 %v441, %v449
    %s455 = sld [smem:[#allocation8 + $0x22]]
    %v456 = vstv %s455
    %v457 = vmul.f32 %v170, %v456
    %v458 = vmul.f32 %v171, %v456
    %v459 = vadd.f32 %v453, %v457
    %v460 = vadd.f32 %v454, %v458
    %s461 = sld [smem:[#allocation8 + $0x23]]
    %v462 = vstv %s461
    %v463 = vmul.f32 %v170, %v462
    %v464 = vmul.f32 %v171, %v462
    %v467 = vrot.slane %v463, 1
    %v468 = vrot.slane %v464, 1
    %v469 = vsel %vm72, %v467, %v468
    %v472 = vadd.f32 %v459, %v469
    %v473 = vadd.f32 %v460, %v468
    %s474 = sld [smem:[#allocation8 + $0x24]]
    %v475 = vstv %s474
    %v476 = vmul.f32 %v170, %v475
    %v477 = vmul.f32 %v171, %v475
    %v480 = vrot.slane %v476, 2
    %v481 = vrot.slane %v477, 2
    %v482 = vsel %vm86, %v480, %v481
    %v485 = vadd.f32 %v472, %v482
    %v486 = vadd.f32 %v473, %v481
    %s487 = sld [smem:[#allocation8 + $0x25]]
    %v488 = vstv %s487
    %v489 = vmul.f32 %v206, %v488
    %v490 = vmul.f32 %v207, %v488
    %v491 = vadd.f32 %v485, %v489
    %v492 = vadd.f32 %v486, %v490
    %s493 = sld [smem:[#allocation8 + $0x26]]
    %v494 = vstv %s493
    %v495 = vmul.f32 %v206, %v494
    %v496 = vmul.f32 %v207, %v494
    %v499 = vrot.slane %v495, 1
    %v500 = vrot.slane %v496, 1
    %v501 = vsel %vm72, %v499, %v500
    %v504 = vadd.f32 %v491, %v501
    %v505 = vadd.f32 %v492, %v500
    %s506 = sld [smem:[#allocation8 + $0x27]]
    %v507 = vstv %s506
    %v508 = vmul.f32 %v206, %v507
    %v509 = vmul.f32 %v207, %v507
    %v512 = vrot.slane %v508, 2
    %v513 = vrot.slane %v509, 2
    %v514 = vsel %vm86, %v512, %v513
    %v517 = vadd.f32 %v504, %v514
    %v518 = vadd.f32 %v505, %v513
    %s519 = sld [smem:[#allocation8 + $0x71]]
    %v520 = vstv %s519
    %v521 = vadd.f32 %v517, %v520
    %v522 = vadd.f32 %v518, %v520
    %v523 = vmax.f32 %v521, 0.0
    %v524 = vmax.f32 %v522, 0.0
    %v527 = vrot.slane %v523, 2
    %v528 = vrot.slane %v523, 4
    %v529 = vrot.slane %v523, 6
    %v530 = vrot.slane %v524, 2
    %v535 = vsel %vm350, %v523, -inf
    %v536 = vrot.slane %v535, 4
    %v537 = vmax.f32 %v535, %v536
    %v538 = vrot.slane %v537, 2
    %v539 = vmax.f32 %v537, %v538
    %v540 = vrot.slane %v539, 1
    %v541 = vmax.f32 %v539, %v540
    %v542 = vsel %vm350, %v527, -inf
    %v543 = vrot.slane %v542, 4
    %v544 = vmax.f32 %v542, %v543
    %v545 = vrot.slane %v544, 2
    %v546 = vmax.f32 %v544, %v545
    %v547 = vrot.slane %v546, 1
    %v548 = vmax.f32 %v546, %v547
    %v549 = vsel %vm350, %v528, -inf
    %v550 = vrot.slane %v549, 4
    %v551 = vmax.f32 %v549, %v550
    %v552 = vrot.slane %v551, 2
    %v553 = vmax.f32 %v551, %v552
    %v554 = vrot.slane %v553, 1
    %v555 = vmax.f32 %v553, %v554
    %v556 = vsel %vm350, %v529, -inf
    %v557 = vrot.slane %v556, 4
    %v558 = vmax.f32 %v556, %v557
    %v559 = vrot.slane %v558, 2
    %v560 = vmax.f32 %v558, %v559
    %v561 = vrot.slane %v560, 1
    %v562 = vmax.f32 %v560, %v561
    %v563 = vsel %vm350, %v524, -inf
    %v564 = vrot.slane %v563, 4
    %v565 = vmax.f32 %v563, %v564
    %v566 = vrot.slane %v565, 2
    %v567 = vmax.f32 %v565, %v566
    %v568 = vrot.slane %v567, 1
    %v569 = vmax.f32 %v567, %v568
    %v570 = vsel %vm350, %v530, -inf
    %v571 = vrot.slane %v570, 4
    %v572 = vmax.f32 %v570, %v571
    %v573 = vrot.slane %v572, 2
    %v574 = vmax.f32 %v572, %v573
    %v575 = vrot.slane %v574, 1
    %v576 = vmax.f32 %v574, %v575
    %s577 = sld [smem:[#allocation8 + $0x28]]
    %v578 = vstv %s577
    %v579 = vmul.f32 %v98, %v578
    %v580 = vmul.f32 %v99, %v578
    %s581 = sld [smem:[#allocation8 + $0x29]]
    %v582 = vstv %s581
    %v583 = vmul.f32 %v98, %v582
    %v584 = vmul.f32 %v99, %v582
    %v587 = vrot.slane %v583, 1
    %v588 = vrot.slane %v584, 1
    %v589 = vsel %vm72, %v587, %v588
    %v592 = vadd.f32 %v579, %v589
    %v593 = vadd.f32 %v580, %v588
    %s594 = sld [smem:[#allocation8 + $0x2a]]
    %v595 = vstv %s594
    %v596 = vmul.f32 %v98, %v595
    %v597 = vmul.f32 %v99, %v595
    %v600 = vrot.slane %v596, 2
    %v601 = vrot.slane %v597, 2
    %v602 = vsel %vm86, %v600, %v601
    %v605 = vadd.f32 %v592, %v602
    %v606 = vadd.f32 %v593, %v601
    %s607 = sld [smem:[#allocation8 + $0x2b]]
    %v608 = vstv %s607
    %v609 = vmul.f32 %v134, %v608
    %v610 = vmul.f32 %v135, %v608
    %v611 = vadd.f32 %v605, %v609
    %v612 = vadd.f32 %v606, %v610
    %s613 = sld [smem:[#allocation8 + $0x2c]]
    %v614 = vstv %s613
    %v615 = vmul.f32 %v134, %v614
    %v616 = vmul.f32 %v135, %v614
    %v619 = vrot.slane %v615, 1
    %v620 = vrot.slane %v616, 1
    %v621 = vsel %vm72, %v619, %v620
    %v624 = vadd.f32 %v611, %v621
    %v625 = vadd.f32 %v612, %v620
    %s626 = sld [smem:[#allocation8 + $0x2d]]
    %v627 = vstv %s626
    %v628 = vmul.f32 %v134, %v627
    %v629 = vmul.f32 %v135, %v627
    %v632 = vrot.slane %v628, 2
    %v633 = vrot.slane %v629, 2
    %v634 = vsel %vm86, %v632, %v633
    %v637 = vadd.f32 %v624, %v634
    %v638 = vadd.f32 %v625, %v633
    %s639 = sld [smem:[#allocation8 + $0x2e]]
    %v640 = vstv %s639
    %v641 = vmul.f32 %v170, %v640
    %v642 = vmul.f32 %v171, %v640
    %v643 = vadd.f32 %v637, %v641
    %v644 = vadd.f32 %v638, %v642
    %s645 = sld [smem:[#allocation8 + $0x2f]]
    %v646 = vstv %s645
    %v647 = vmul.f32 %v170, %v646
    %v648 = vmul.f32 %v171, %v646
    %v651 = vrot.slane %v647, 1
    %v652 = vrot.slane %v648, 1
    %v653 = vsel %vm72, %v651, %v652
    %v656 = vadd.f32 %v643, %v653
    %v657 = vadd.f32 %v644, %v652
    %s658 = sld [smem:[#allocation8 + $0x30]]
    %v659 = vstv %s658
    %v660 = vmul.f32 %v170, %v659
    %v661 = vmul.f32 %v171, %v659
    %v664 = vrot.slane %v660, 2
    %v665 = vrot.slane %v661, 2
    %v666 = vsel %vm86, %v664, %v665
    %v669 = vadd.f32 %v656, %v666
    %v670 = vadd.f32 %v657, %v665
    %s671 = sld [smem:[#allocation8 + $0x31]]
    %v672 = vstv %s671
    %v673 = vmul.f32 %v206, %v672
    %v674 = vmul.f32 %v207, %v672
    %v675 = vadd.f32 %v669, %v673
    %v676 = vadd.f32 %v670, %v674
    %s677 = sld [smem:[#allocation8 + $0x32]]
    %v678 = vstv %s677
    %v679 = vmul.f32 %v206, %v678
    %v680 = vmul.f32 %v207, %v678
    %v683 = vrot.slane %v679, 1
    %v684 = vrot.slane %v680, 1
    %v685 = vsel %vm72, %v683, %v684
    %v688 = vadd.f32 %v675, %v685
    %v689 = vadd.f32 %v676, %v684
    %s690 = sld [smem:[#allocation8 + $0x33]]
    %v691 = vstv %s690
    %v692 = vmul.f32 %v206, %v691
    %v693 = vmul.f32 %v207, %v691
    %v696 = vrot.slane %v692, 2
    %v697 = vrot.slane %v693, 2
    %v698 = vsel %vm86, %v696, %v697
    %v701 = vadd.f32 %v688, %v698
    %v702 = vadd.f32 %v689, %v697
    %s703 = sld [smem:[#allocation8 + $0x72]]
    %v704 = vstv %s703
    %v705 = vadd.f32 %v701, %v704
    %v706 = vadd.f32 %v702, %v704
    %v707 = vmax.f32 %v705, 0.0
    %v708 = vmax.f32 %v706, 0.0
    %v711 = vrot.slane %v707, 2
    %v712 = vrot.slane %v707, 4
    %v713 = vrot.slane %v707, 6
    %v714 = vrot.slane %v708, 2
    %v719 = vsel %vm350, %v707, -inf
    %v720 = vrot.slane %v719, 4
    %v721 = vmax.f32 %v719, %v720
    %v722 = vrot.slane %v721, 2
    %v723 = vmax.f32 %v721, %v722
    %v724 = vrot.slane %v723, 1
    %v725 = vmax.f32 %v723, %v724
    %v726 = vsel %vm350, %v711, -inf
    %v727 = vrot.slane %v726, 4
    %v728 = vmax.f32 %v726, %v727
    %v729 = vrot.slane %v728, 2
    %v730 = vmax.f32 %v728, %v729
    %v731 = vrot.slane %v730, 1
    %v732 = vmax.f32 %v730, %v731
    %v733 = vsel %vm350, %v712, -inf
    %v734 = vrot.slane %v733, 4
    %v735 = vmax.f32 %v733, %v734
    %v736 = vrot.slane %v735, 2
    %v737 = vmax.f32 %v735, %v736
    %v738 = vrot.slane %v737, 1
    %v739 = vmax.f32 %v737, %v738
    %v740 = vsel %vm350, %v713, -inf
    %v741 = vrot.slane %v740, 4
    %v742 = vmax.f32 %v740, %v741
    %v743 = vrot.slane %v742, 2
    %v744 = vmax.f32 %v742, %v743
    %v745 = vrot.slane %v744, 1
    %v746 = vmax.f32 %v744, %v745
    %v747 = vsel %vm350, %v708, -inf
    %v748 = vrot.slane %v747, 4
    %v749 = vmax.f32 %v747, %v748
    %v750 = vrot.slane %v749, 2
    %v751 = vmax.f32 %v749, %v750
    %v752 = vrot.slane %v751, 1
    %v753 = vmax.f32 %v751, %v752
    %v754 = vsel %vm350, %v714, -inf
    %v755 = vrot.slane %v754, 4
    %v756 = vmax.f32 %v754, %v755
    %v757 = vrot.slane %v756, 2
    %v758 = vmax.f32 %v756, %v757
    %v759 = vrot.slane %v758, 1
    %v760 = vmax.f32 %v758, %v759
    %s761 = sld [smem:[#allocation8 + $0x34]]
    %v762 = vstv %s761
    %v763 = vmul.f32 %v98, %v762
    %v764 = vmul.f32 %v99, %v762
    %s765 = sld [smem:[#allocation8 + $0x35]]
    %v766 = vstv %s765
    %v767 = vmul.f32 %v98, %v766
    %v768 = vmul.f32 %v99, %v766
    %v771 = vrot.slane %v767, 1
    %v772 = vrot.slane %v768, 1
    %v773 = vsel %vm72, %v771, %v772
    %v776 = vadd.f32 %v763, %v773
    %v777 = vadd.f32 %v764, %v772
    %s778 = sld [smem:[#allocation8 + $0x36]]
    %v779 = vstv %s778
    %v780 = vmul.f32 %v98, %v779
    %v781 = vmul.f32 %v99, %v779
    %v784 = vrot.slane %v780, 2
    %v785 = vrot.slane %v781, 2
    %v786 = vsel %vm86, %v784, %v785
    %v789 = vadd.f32 %v776, %v786
    %v790 = vadd.f32 %v777, %v785
    %s791 = sld [smem:[#allocation8 + $0x37]]
    %v792 = vstv %s791
    %v793 = vmul.f32 %v134, %v792
    %v794 = vmul.f32 %v135, %v792
    %v795 = vadd.f32 %v789, %v793
    %v796 = vadd.f32 %v790, %v794
    %s797 = sld [smem:[#allocation8 + $0x38]]
    %v798 = vstv %s797
    %v799 = vmul.f32 %v134, %v798
    %v800 = vmul.f32 %v135, %v798
    %v803 = vrot.slane %v799, 1
    %v804 = vrot.slane %v800, 1
    %v805 = vsel %vm72, %v803, %v804
    %v808 = vadd.f32 %v795, %v805
    %v809 = vadd.f32 %v796, %v804
    %s810 = sld [smem:[#allocation8 + $0x39]]
    %v811 = vstv %s810
    %v812 = vmul.f32 %v134, %v811
    %v813 = vmul.f32 %v135, %v811
    %v816 = vrot.slane %v812, 2
    %v817 = vrot.slane %v813, 2
    %v818 = vsel %vm86, %v816, %v817
    %v821 = vadd.f32 %v808, %v818
    %v822 = vadd.f32 %v809, %v817
    %s823 = sld [smem:[#allocation8 + $0x3a]]
    %v824 = vstv %s823
    %v825 = vmul.f32 %v170, %v824
    %v826 = vmul.f32 %v171, %v824
    %v827 = vadd.f32 %v821, %v825
    %v828 = vadd.f32 %v822, %v826
    %s829 = sld [smem:[#allocation8 + $0x3b]]
    %v830 = vstv %s829
    %v831 = vmul.f32 %v170, %v830
    %v832 = vmul.f32 %v171, %v830
    %v835 = vrot.slane %v831, 1
    %v836 = vrot.slane %v832, 1
    %v837 = vsel %vm72, %v835, %v836
    %v840 = vadd.f32 %v827, %v837
    %v841 = vadd.f32 %v828, %v836
    %s842 = sld [smem:[#allocation8 + $0x3c]]
    %v843 = vstv %s842
    %v844 = vmul.f32 %v170, %v843
    %v845 = vmul.f32 %v171, %v843
    %v848 = vrot.slane %v844, 2
    %v849 = vrot.slane %v845, 2
    %v850 = vsel %vm86, %v848, %v849
    %v853 = vadd.f32 %v840, %v850
    %v854 = vadd.f32 %v841, %v849
    %s855 = sld [smem:[#allocation8 + $0x3d]]
    %v856 = vstv %s855
    %v857 = vmul.f32 %v206, %v856
    %v858 = vmul.f32 %v207, %v856
    %v859 = vadd.f32 %v853, %v857
    %v860 = vadd.f32 %v854, %v858
    %s861 = sld [smem:[#allocation8 + $0x3e]]
    %v862 = vstv %s861
    %v863 = vmul.f32 %v206, %v862
    %v864 = vmul.f32 %v207, %v862
    %v867 = vrot.slane %v863, 1
    %v868 = vrot.slane %v864, 1
    %v869 = vsel %vm72, %v867, %v868
    %v872 = vadd.f32 %v859, %v869
    %v873 = vadd.f32 %v860, %v868
    %s874 = sld [smem:[#allocation8 + $0x3f]]
    %v875 = vstv %s874
    %v876 = vmul.f32 %v206, %v875
    %v877 = vmul.f32 %v207, %v875
    %v880 = vrot.slane %v876, 2
    %v881 = vrot.slane %v877, 2
    %v882 = vsel %vm86, %v880, %v881
    %v885 = vadd.f32 %v872, %v882
    %v886 = vadd.f32 %v873, %v881
    %s887 = sld [smem:[#allocation8 + $0x73]]
    %v888 = vstv %s887
    %v889 = vadd.f32 %v885, %v888
    %v890 = vadd.f32 %v886, %v888
    %v891 = vmax.f32 %v889, 0.0
    %v892 = vmax.f32 %v890, 0.0
    %v895 = vrot.slane %v891, 2
    %v896 = vrot.slane %v891, 4
    %v897 = vrot.slane %v891, 6
    %v898 = vrot.slane %v892, 2
    %v903 = vsel %vm350, %v891, -inf
    %v904 = vrot.slane %v903, 4
    %v905 = vmax.f32 %v903, %v904
    %v906 = vrot.slane %v905, 2
    %v907 = vmax.f32 %v905, %v906
    %v908 = vrot.slane %v907, 1
    %v909 = vmax.f32 %v907, %v908
    %v910 = vsel %vm350, %v895, -inf
    %v911 = vrot.slane %v910, 4
    %v912 = vmax.f32 %v910, %v911
    %v913 = vrot.slane %v912, 2
    %v914 = vmax.f32 %v912, %v913
    %v915 = vrot.slane %v914, 1
    %v916 = vmax.f32 %v914, %v915
    %v917 = vsel %vm350, %v896, -inf
    %v918 = vrot.slane %v917, 4
    %v919 = vmax.f32 %v917, %v918
    %v920 = vrot.slane %v919, 2
    %v921 = vmax.f32 %v919, %v920
    %v922 = vrot.slane %v921, 1
    %v923 = vmax.f32 %v921, %v922
    %v924 = vsel %vm350, %v897, -inf
    %v925 = vrot.slane %v924, 4
    %v926 = vmax.f32 %v924, %v925
    %v927 = vrot.slane %v926, 2
    %v928 = vmax.f32 %v926, %v927
    %v929 = vrot.slane %v928, 1
    %v930 = vmax.f32 %v928, %v929
    %v931 = vsel %vm350, %v892, -inf
    %v932 = vrot.slane %v931, 4
    %v933 = vmax.f32 %v931, %v932
    %v934 = vrot.slane %v933, 2
    %v935 = vmax.f32 %v933, %v934
    %v936 = vrot.slane %v935, 1
    %v937 = vmax.f32 %v935, %v936
    %v938 = vsel %vm350, %v898, -inf
    %v939 = vrot.slane %v938, 4
    %v940 = vmax.f32 %v938, %v939
    %v941 = vrot.slane %v940, 2
    %v942 = vmax.f32 %v940, %v941
    %v943 = vrot.slane %v942, 1
    %v944 = vmax.f32 %v942, %v943
    %s945 = sld [smem:[#allocation8 + $0x40]]
    %v946 = vstv %s945
    %v947 = vmul.f32 %v98, %v946
    %v948 = vmul.f32 %v99, %v946
    %s949 = sld [smem:[#allocation8 + $0x41]]
    %v950 = vstv %s949
    %v951 = vmul.f32 %v98, %v950
    %v952 = vmul.f32 %v99, %v950
    %v955 = vrot.slane %v951, 1
    %v956 = vrot.slane %v952, 1
    %v957 = vsel %vm72, %v955, %v956
    %v960 = vadd.f32 %v947, %v957
    %v961 = vadd.f32 %v948, %v956
    %s962 = sld [smem:[#allocation8 + $0x42]]
    %v963 = vstv %s962
    %v964 = vmul.f32 %v98, %v963
    %v965 = vmul.f32 %v99, %v963
    %v968 = vrot.slane %v964, 2
    %v969 = vrot.slane %v965, 2
    %v970 = vsel %vm86, %v968, %v969
    %v973 = vadd.f32 %v960, %v970
    %v974 = vadd.f32 %v961, %v969
    %s975 = sld [smem:[#allocation8 + $0x43]]
    %v976 = vstv %s975
    %v977 = vmul.f32 %v134, %v976
    %v978 = vmul.f32 %v135, %v976
    %v979 = vadd.f32 %v973, %v977
    %v980 = vadd.f32 %v974, %v978
    %s981 = sld [smem:[#allocation8 + $0x44]]
    %v982 = vstv %s981
    %v983 = vmul.f32 %v134, %v982
    %v984 = vmul.f32 %v135, %v982
    %v987 = vrot.slane %v983, 1
    %v988 = vrot.slane %v984, 1
    %v989 = vsel %vm72, %v987, %v988
    %v992 = vadd.f32 %v979, %v989
    %v993 = vadd.f32 %v980, %v988
    %s994 = sld [smem:[#allocation8 + $0x45]]
    %v995 = vstv %s994
    %v996 = vmul.f32 %v134, %v995
    %v997 = vmul.f32 %v135, %v995
    %v1000 = vrot.slane %v996, 2
    %v1001 = vrot.slane %v997, 2
    %v1002 = vsel %vm86, %v1000, %v1001
    %v1005 = vadd.f32 %v992, %v1002
    %v1006 = vadd.f32 %v993, %v1001
    %s1007 = sld [smem:[#allocation8 + $0x46]]
    %v1008 = vstv %s1007
    %v1009 = vmul.f32 %v170, %v1008
    %v1010 = vmul.f32 %v171, %v1008
    %v1011 = vadd.f32 %v1005, %v1009
    %v1012 = vadd.f32 %v1006, %v1010
    %s1013 = sld [smem:[#allocation8 + $0x47]]
    %v1014 = vstv %s1013
    %v1015 = vmul.f32 %v170, %v1014
    %v1016 = vmul.f32 %v171, %v1014
    %v1019 = vrot.slane %v1015, 1
    %v1020 = vrot.slane %v1016, 1
    %v1021 = vsel %vm72, %v1019, %v1020
    %v1024 = vadd.f32 %v1011, %v1021
    %v1025 = vadd.f32 %v1012, %v1020
    %s1026 = sld [smem:[#allocation8 + $0x48]]
    %v1027 = vstv %s1026
    %v1028 = vmul.f32 %v170, %v1027
    %v1029 = vmul.f32 %v171, %v1027
    %v1032 = vrot.slane %v1028, 2
    %v1033 = vrot.slane %v1029, 2
    %v1034 = vsel %vm86, %v1032, %v1033
    %v1037 = vadd.f32 %v1024, %v1034
    %v1038 = vadd.f32 %v1025, %v1033
    %s1039 = sld [smem:[#allocation8 + $0x49]]
    %v1040 = vstv %s1039
    %v1041 = vmul.f32 %v206, %v1040
    %v1042 = vmul.f32 %v207, %v1040
    %v1043 = vadd.f32 %v1037, %v1041
    %v1044 = vadd.f32 %v1038, %v1042
    %s1045 = sld [smem:[#allocation8 + $0x4a]]
    %v1046 = vstv %s1045
    %v1047 = vmul.f32 %v206, %v1046
    %v1048 = vmul.f32 %v207, %v1046
    %v1051 = vrot.slane %v1047, 1
    %v1052 = vrot.slane %v1048, 1
    %v1053 = vsel %vm72, %v1051, %v1052
    %v1056 = vadd.f32 %v1043, %v1053
    %v1057 = vadd.f32 %v1044, %v1052
    %s1058 = sld [smem:[#allocation8 + $0x4b]]
    %v1059 = vstv %s1058
    %v1060 = vmul.f32 %v206, %v1059
    %v1061 = vmul.f32 %v207, %v1059
    %v1064 = vrot.slane %v1060, 2
    %v1065 = vrot.slane %v1061, 2
    %v1066 = vsel %vm86, %v1064, %v1065
    %v1069 = vadd.f32 %v1056, %v1066
    %v1070 = vadd.f32 %v1057, %v1065
    %s1071 = sld [smem:[#allocation8 + $0x74]]
    %v1072 = vstv %s1071
    %v1073 = vadd.f32 %v1069, %v1072
    %v1074 = vadd.f32 %v1070, %v1072
    %v1075 = vmax.f32 %v1073, 0.0
    %v1076 = vmax.f32 %v1074, 0.0
    %v1079 = vrot.slane %v1075, 2
    %v1080 = vrot.slane %v1075, 4
    %v1081 = vrot.slane %v1075, 6
    %v1082 = vrot.slane %v1076, 2
    %v1087 = vsel %vm350, %v1075, -inf
    %v1088 = vrot.slane %v1087, 4
    %v1089 = vmax.f32 %v1087, %v1088
    %v1090 = vrot.slane %v1089, 2
    %v1091 = vmax.f32 %v1089, %v1090
    %v1092 = vrot.slane %v1091, 1
    %v1093 = vmax.f32 %v1091, %v1092
    %v1094 = vsel %vm350, %v1079, -inf
    %v1095 = vrot.slane %v1094, 4
    %v1096 = vmax.f32 %v1094, %v1095
    %v1097 = vrot.slane %v1096, 2
    %v1098 = vmax.f32 %v1096, %v1097
    %v1099 = vrot.slane %v1098, 1
    %v1100 = vmax.f32 %v1098, %v1099
    %v1101 = vsel %vm350, %v1080, -inf
    %v1102 = vrot.slane %v1101, 4
    %v1103 = vmax.f32 %v1101, %v1102
    %v1104 = vrot.slane %v1103, 2
    %v1105 = vmax.f32 %v1103, %v1104
    %v1106 = vrot.slane %v1105, 1
    %v1107 = vmax.f32 %v1105, %v1106
    %v1108 = vsel %vm350, %v1081, -inf
    %v1109 = vrot.slane %v1108, 4
    %v1110 = vmax.f32 %v1108, %v1109
    %v1111 = vrot.slane %v1110, 2
    %v1112 = vmax.f32 %v1110, %v1111
    %v1113 = vrot.slane %v1112, 1
    %v1114 = vmax.f32 %v1112, %v1113
    %v1115 = vsel %vm350, %v1076, -inf
    %v1116 = vrot.slane %v1115, 4
    %v1117 = vmax.f32 %v1115, %v1116
    %v1118 = vrot.slane %v1117, 2
    %v1119 = vmax.f32 %v1117, %v1118
    %v1120 = vrot.slane %v1119, 1
    %v1121 = vmax.f32 %v1119, %v1120
    %v1122 = vsel %vm350, %v1082, -inf
    %v1123 = vrot.slane %v1122, 4
    %v1124 = vmax.f32 %v1122, %v1123
    %v1125 = vrot.slane %v1124, 2
    %v1126 = vmax.f32 %v1124, %v1125
    %v1127 = vrot.slane %v1126, 1
    %v1128 = vmax.f32 %v1126, %v1127
    %s1129 = sld [smem:[#allocation8 + $0x4c]]
    %v1130 = vstv %s1129
    %v1131 = vmul.f32 %v98, %v1130
    %v1132 = vmul.f32 %v99, %v1130
    %s1133 = sld [smem:[#allocation8 + $0x4d]]
    %v1134 = vstv %s1133
    %v1135 = vmul.f32 %v98, %v1134
    %v1136 = vmul.f32 %v99, %v1134
    %v1139 = vrot.slane %v1135, 1
    %v1140 = vrot.slane %v1136, 1
    %v1141 = vsel %vm72, %v1139, %v1140
    %v1144 = vadd.f32 %v1131, %v1141
    %v1145 = vadd.f32 %v1132, %v1140
    %s1146 = sld [smem:[#allocation8 + $0x4e]]
    %v1147 = vstv %s1146
    %v1148 = vmul.f32 %v98, %v1147
    %v1149 = vmul.f32 %v99, %v1147
    %v1152 = vrot.slane %v1148, 2
    %v1153 = vrot.slane %v1149, 2
    %v1154 = vsel %vm86, %v1152, %v1153
    %v1157 = vadd.f32 %v1144, %v1154
    %v1158 = vadd.f32 %v1145, %v1153
    %s1159 = sld [smem:[#allocation8 + $0x4f]]
    %v1160 = vstv %s1159
    %v1161 = vmul.f32 %v134, %v1160
    %v1162 = vmul.f32 %v135, %v1160
    %v1163 = vadd.f32 %v1157, %v1161
    %v1164 = vadd.f32 %v1158, %v1162
    %s1165 = sld [smem:[#allocation8 + $0x50]]
    %v1166 = vstv %s1165
    %v1167 = vmul.f32 %v134, %v1166
    %v1168 = vmul.f32 %v135, %v1166
    %v1171 = vrot.slane %v1167, 1
    %v1172 = vrot.slane %v1168, 1
    %v1173 = vsel %vm72, %v1171, %v1172
    %v1176 = vadd.f32 %v1163, %v1173
    %v1177 = vadd.f32 %v1164, %v1172
    %s1178 = sld [smem:[#allocation8 + $0x51]]
    %v1179 = vstv %s1178
    %v1180 = vmul.f32 %v134, %v1179
    %v1181 = vmul.f32 %v135, %v1179
    %v1184 = vrot.slane %v1180, 2
    %v1185 = vrot.slane %v1181, 2
    %v1186 = vsel %vm86, %v1184, %v1185
    %v1189 = vadd.f32 %v1176, %v1186
    %v1190 = vadd.f32 %v1177, %v1185
    %s1191 = sld [smem:[#allocation8 + $0x52]]
    %v1192 = vstv %s1191
    %v1193 = vmul.f32 %v170, %v1192
    %v1194 = vmul.f32 %v171, %v1192
    %v1195 = vadd.f32 %v1189, %v1193
    %v1196 = vadd.f32 %v1190, %v1194
    %s1197 = sld [smem:[#allocation8 + $0x53]]
    %v1198 = vstv %s1197
    %v1199 = vmul.f32 %v170, %v1198
    %v1200 = vmul.f32 %v171, %v1198
    %v1203 = vrot.slane %v1199, 1
    %v1204 = vrot.slane %v1200, 1
    %v1205 = vsel %vm72, %v1203, %v1204
    %v1208 = vadd.f32 %v1195, %v1205
    %v1209 = vadd.f32 %v1196, %v1204
    %s1210 = sld [smem:[#allocation8 + $0x54]]
    %v1211 = vstv %s1210
    %v1212 = vmul.f32 %v170, %v1211
    %v1213 = vmul.f32 %v171, %v1211
    %v1216 = vrot.slane %v1212, 2
    %v1217 = vrot.slane %v1213, 2
    %v1218 = vsel %vm86, %v1216, %v1217
    %v1221 = vadd.f32 %v1208, %v1218
    %v1222 = vadd.f32 %v1209, %v1217
    %s1223 = sld [smem:[#allocation8 + $0x55]]
    %v1224 = vstv %s1223
    %v1225 = vmul.f32 %v206, %v1224
    %v1226 = vmul.f32 %v207, %v1224
    %v1227 = vadd.f32 %v1221, %v1225
    %v1228 = vadd.f32 %v1222, %v1226
    %s1229 = sld [smem:[#allocation8 + $0x56]]
    %v1230 = vstv %s1229
    %v1231 = vmul.f32 %v206, %v1230
    %v1232 = vmul.f32 %v207, %v1230
    %v1235 = vrot.slane %v1231, 1
    %v1236 = vrot.slane %v1232, 1
    %v1237 = vsel %vm72, %v1235, %v1236
    %v1240 = vadd.f32 %v1227, %v1237
    %v1241 = vadd.f32 %v1228, %v1236
    %s1242 = sld [smem:[#allocation8 + $0x57]]
    %v1243 = vstv %s1242
    %v1244 = vmul.f32 %v206, %v1243
    %v1245 = vmul.f32 %v207, %v1243
    %v1248 = vrot.slane %v1244, 2
    %v1249 = vrot.slane %v1245, 2
    %v1250 = vsel %vm86, %v1248, %v1249
    %v1253 = vadd.f32 %v1240, %v1250
    %v1254 = vadd.f32 %v1241, %v1249
    %s1255 = sld [smem:[#allocation8 + $0x75]]
    %v1256 = vstv %s1255
    %v1257 = vadd.f32 %v1253, %v1256
    %v1258 = vadd.f32 %v1254, %v1256
    %v1259 = vmax.f32 %v1257, 0.0
    %v1260 = vmax.f32 %v1258, 0.0
    %v1263 = vrot.slane %v1259, 2
    %v1264 = vrot.slane %v1259, 4
    %v1265 = vrot.slane %v1259, 6
    %v1266 = vrot.slane %v1260, 2
    %v1271 = vsel %vm350, %v1259, -inf
    %v1272 = vrot.slane %v1271, 4
    %v1273 = vmax.f32 %v1271, %v1272
    %v1274 = vrot.slane %v1273, 2
    %v1275 = vmax.f32 %v1273, %v1274
    %v1276 = vrot.slane %v1275, 1
    %v1277 = vmax.f32 %v1275, %v1276
    %v1278 = vsel %vm350, %v1263, -inf
    %v1279 = vrot.slane %v1278, 4
    %v1280 = vmax.f32 %v1278, %v1279
    %v1281 = vrot.slane %v1280, 2
    %v1282 = vmax.f32 %v1280, %v1281
    %v1283 = vrot.slane %v1282, 1
    %v1284 = vmax.f32 %v1282, %v1283
    %v1285 = vsel %vm350, %v1264, -inf
    %v1286 = vrot.slane %v1285, 4
    %v1287 = vmax.f32 %v1285, %v1286
    %v1288 = vrot.slane %v1287, 2
    %v1289 = vmax.f32 %v1287, %v1288
    %v1290 = vrot.slane %v1289, 1
    %v1291 = vmax.f32 %v1289, %v1290
    %v1292 = vsel %vm350, %v1265, -inf
    %v1293 = vrot.slane %v1292, 4
    %v1294 = vmax.f32 %v1292, %v1293
    %v1295 = vrot.slane %v1294, 2
    %v1296 = vmax.f32 %v1294, %v1295
    %v1297 = vrot.slane %v1296, 1
    %v1298 = vmax.f32 %v1296, %v1297
    %v1299 = vsel %vm350, %v1260, -inf
    %v1300 = vrot.slane %v1299, 4
    %v1301 = vmax.f32 %v1299, %v1300
    %v1302 = vrot.slane %v1301, 2
    %v1303 = vmax.f32 %v1301, %v1302
    %v1304 = vrot.slane %v1303, 1
    %v1305 = vmax.f32 %v1303, %v1304
    %v1306 = vsel %vm350, %v1266, -inf
    %v1307 = vrot.slane %v1306, 4
    %v1308 = vmax.f32 %v1306, %v1307
    %v1309 = vrot.slane %v1308, 2
    %v1310 = vmax.f32 %v1308, %v1309
    %v1311 = vrot.slane %v1310, 1
    %v1312 = vmax.f32 %v1310, %v1311
    %s1313 = sld [smem:[#allocation8 + $0x58]]
    %v1314 = vstv %s1313
    %v1315 = vmul.f32 %v98, %v1314
    %v1316 = vmul.f32 %v99, %v1314
    %s1317 = sld [smem:[#allocation8 + $0x59]]
    %v1318 = vstv %s1317
    %v1319 = vmul.f32 %v98, %v1318
    %v1320 = vmul.f32 %v99, %v1318
    %v1323 = vrot.slane %v1319, 1
    %v1324 = vrot.slane %v1320, 1
    %v1325 = vsel %vm72, %v1323, %v1324
    %v1328 = vadd.f32 %v1315, %v1325
    %v1329 = vadd.f32 %v1316, %v1324
    %s1330 = sld [smem:[#allocation8 + $0x5a]]
    %v1331 = vstv %s1330
    %v1332 = vmul.f32 %v98, %v1331
    %v1333 = vmul.f32 %v99, %v1331
    %v1336 = vrot.slane %v1332, 2
    %v1337 = vrot.slane %v1333, 2
    %v1338 = vsel %vm86, %v1336, %v1337
    %v1341 = vadd.f32 %v1328, %v1338
    %v1342 = vadd.f32 %v1329, %v1337
    %s1343 = sld [smem:[#allocation8 + $0x5b]]
    %v1344 = vstv %s1343
    %v1345 = vmul.f32 %v134, %v1344
    %v1346 = vmul.f32 %v135, %v1344
    %v1347 = vadd.f32 %v1341, %v1345
    %v1348 = vadd.f32 %v1342, %v1346
    %s1349 = sld [smem:[#allocation8 + $0x5c]]
    %v1350 = vstv %s1349
    %v1351 = vmul.f32 %v134, %v1350
    %v1352 = vmul.f32 %v135, %v1350
    %v1355 = vrot.slane %v1351, 1
    %v1356 = vrot.slane %v1352, 1
    %v1357 = vsel %vm72, %v1355, %v1356
    %v1360 = vadd.f32 %v1347, %v1357
    %v1361 = vadd.f32 %v1348, %v1356
    %s1362 = sld [smem:[#allocation8 + $0x5d]]
    %v1363 = vstv %s1362
    %v1364 = vmul.f32 %v134, %v1363
    %v1365 = vmul.f32 %v135, %v1363
    %v1368 = vrot.slane %v1364, 2
    %v1369 = vrot.slane %v1365, 2
    %v1370 = vsel %vm86, %v1368, %v1369
    %v1373 = vadd.f32 %v1360, %v1370
    %v1374 = vadd.f32 %v1361, %v1369
    %s1375 = sld [smem:[#allocation8 + $0x5e]]
    %v1376 = vstv %s1375
    %v1377 = vmul.f32 %v170, %v1376
    %v1378 = vmul.f32 %v171, %v1376
    %v1379 = vadd.f32 %v1373, %v1377
    %v1380 = vadd.f32 %v1374, %v1378
    %s1381 = sld [smem:[#allocation8 + $0x5f]]
    %v1382 = vstv %s1381
    %v1383 = vmul.f32 %v170, %v1382
    %v1384 = vmul.f32 %v171, %v1382
    %v1387 = vrot.slane %v1383, 1
    %v1388 = vrot.slane %v1384, 1
    %v1389 = vsel %vm72, %v1387, %v1388
    %v1392 = vadd.f32 %v1379, %v1389
    %v1393 = vadd.f32 %v1380, %v1388
    %s1394 = sld [smem:[#allocation8 + $0x60]]
    %v1395 = vstv %s1394
    %v1396 = vmul.f32 %v170, %v1395
    %v1397 = vmul.f32 %v171, %v1395
    %v1400 = vrot.slane %v1396, 2
    %v1401 = vrot.slane %v1397, 2
    %v1402 = vsel %vm86, %v1400, %v1401
    %v1405 = vadd.f32 %v1392, %v1402
    %v1406 = vadd.f32 %v1393, %v1401
    %s1407 = sld [smem:[#allocation8 + $0x61]]
    %v1408 = vstv %s1407
    %v1409 = vmul.f32 %v206, %v1408
    %v1410 = vmul.f32 %v207, %v1408
    %v1411 = vadd.f32 %v1405, %v1409
    %v1412 = vadd.f32 %v1406, %v1410
    %s1413 = sld [smem:[#allocation8 + $0x62]]
    %v1414 = vstv %s1413
    %v1415 = vmul.f32 %v206, %v1414
    %v1416 = vmul.f32 %v207, %v1414
    %v1419 = vrot.slane %v1415, 1
    %v1420 = vrot.slane %v1416, 1
    %v1421 = vsel %vm72, %v1419, %v1420
    %v1424 = vadd.f32 %v1411, %v1421
    %v1425 = vadd.f32 %v1412, %v1420
    %s1426 = sld [smem:[#allocation8 + $0x63]]
    %v1427 = vstv %s1426
    %v1428 = vmul.f32 %v206, %v1427
    %v1429 = vmul.f32 %v207, %v1427
    %v1432 = vrot.slane %v1428, 2
    %v1433 = vrot.slane %v1429, 2
    %v1434 = vsel %vm86, %v1432, %v1433
    %v1437 = vadd.f32 %v1424, %v1434
    %v1438 = vadd.f32 %v1425, %v1433
    %s1439 = sld [smem:[#allocation8 + $0x76]]
    %v1440 = vstv %s1439
    %v1441 = vadd.f32 %v1437, %v1440
    %v1442 = vadd.f32 %v1438, %v1440
    %v1443 = vmax.f32 %v1441, 0.0
    %v1444 = vmax.f32 %v1442, 0.0
    %v1447 = vrot.slane %v1443, 2
    %v1448 = vrot.slane %v1443, 4
    %v1449 = vrot.slane %v1443, 6
    %v1450 = vrot.slane %v1444, 2
    %v1455 = vsel %vm350, %v1443, -inf
    %v1456 = vrot.slane %v1455, 4
    %v1457 = vmax.f32 %v1455, %v1456
    %v1458 = vrot.slane %v1457, 2
    %v1459 = vmax.f32 %v1457, %v1458
    %v1460 = vrot.slane %v1459, 1
    %v1461 = vmax.f32 %v1459, %v1460
    %v1462 = vsel %vm350, %v1447, -inf
    %v1463 = vrot.slane %v1462, 4
    %v1464 = vmax.f32 %v1462, %v1463
    %v1465 = vrot.slane %v1464, 2
    %v1466 = vmax.f32 %v1464, %v1465
    %v1467 = vrot.slane %v1466, 1
    %v1468 = vmax.f32 %v1466, %v1467
    %v1469 = vsel %vm350, %v1448, -inf
    %v1470 = vrot.slane %v1469, 4
    %v1471 = vmax.f32 %v1469, %v1470
    %v1472 = vrot.slane %v1471, 2
    %v1473 = vmax.f32 %v1471, %v1472
    %v1474 = vrot.slane %v1473, 1
    %v1475 = vmax.f32 %v1473, %v1474
    %v1476 = vsel %vm350, %v1449, -inf
    %v1477 = vrot.slane %v1476, 4
    %v1478 = vmax.f32 %v1476, %v1477
    %v1479 = vrot.slane %v1478, 2
    %v1480 = vmax.f32 %v1478, %v1479
    %v1481 = vrot.slane %v1480, 1
    %v1482 = vmax.f32 %v1480, %v1481
    %v1483 = vsel %vm350, %v1444, -inf
    %v1484 = vrot.slane %v1483, 4
    %v1485 = vmax.f32 %v1483, %v1484
    %v1486 = vrot.slane %v1485, 2
    %v1487 = vmax.f32 %v1485, %v1486
    %v1488 = vrot.slane %v1487, 1
    %v1489 = vmax.f32 %v1487, %v1488
    %v1490 = vsel %vm350, %v1450, -inf
    %v1491 = vrot.slane %v1490, 4
    %v1492 = vmax.f32 %v1490, %v1491
    %v1493 = vrot.slane %v1492, 2
    %v1494 = vmax.f32 %v1492, %v1493
    %v1495 = vrot.slane %v1494, 1
    %v1496 = vmax.f32 %v1494, %v1495
    %s1497 = sld [smem:[#allocation8 + $0x64]]
    %v1498 = vstv %s1497
    %v1499 = vmul.f32 %v98, %v1498
    %v1500 = vmul.f32 %v99, %v1498
    %s1501 = sld [smem:[#allocation8 + $0x65]]
    %v1502 = vstv %s1501
    %v1503 = vmul.f32 %v98, %v1502
    %v1504 = vmul.f32 %v99, %v1502
    %v1507 = vrot.slane %v1503, 1
    %v1508 = vrot.slane %v1504, 1
    %v1509 = vsel %vm72, %v1507, %v1508
    %v1512 = vadd.f32 %v1499, %v1509
    %v1513 = vadd.f32 %v1500, %v1508
    %s1514 = sld [smem:[#allocation8 + $0x66]]
    %v1515 = vstv %s1514
    %v1516 = vmul.f32 %v98, %v1515
    %v1517 = vmul.f32 %v99, %v1515
    %v1520 = vrot.slane %v1516, 2
    %v1521 = vrot.slane %v1517, 2
    %v1522 = vsel %vm86, %v1520, %v1521
    %v1525 = vadd.f32 %v1512, %v1522
    %v1526 = vadd.f32 %v1513, %v1521
    %s1527 = sld [smem:[#allocation8 + $0x67]]
    %v1528 = vstv %s1527
    %v1529 = vmul.f32 %v134, %v1528
    %v1530 = vmul.f32 %v135, %v1528
    %v1531 = vadd.f32 %v1525, %v1529
    %v1532 = vadd.f32 %v1526, %v1530
    %s1533 = sld [smem:[#allocation8 + $0x68]]
    %v1534 = vstv %s1533
    %v1535 = vmul.f32 %v134, %v1534
    %v1536 = vmul.f32 %v135, %v1534
    %v1539 = vrot.slane %v1535, 1
    %v1540 = vrot.slane %v1536, 1
    %v1541 = vsel %vm72, %v1539, %v1540
    %v1544 = vadd.f32 %v1531, %v1541
    %v1545 = vadd.f32 %v1532, %v1540
    %s1546 = sld [smem:[#allocation8 + $0x69]]
    %v1547 = vstv %s1546
    %v1548 = vmul.f32 %v134, %v1547
    %v1549 = vmul.f32 %v135, %v1547
    %v1552 = vrot.slane %v1548, 2
    %v1553 = vrot.slane %v1549, 2
    %v1554 = vsel %vm86, %v1552, %v1553
    %v1557 = vadd.f32 %v1544, %v1554
    %v1558 = vadd.f32 %v1545, %v1553
    %s1559 = sld [smem:[#allocation8 + $0x6a]]
    %v1560 = vstv %s1559
    %v1561 = vmul.f32 %v170, %v1560
    %v1562 = vmul.f32 %v171, %v1560
    %v1563 = vadd.f32 %v1557, %v1561
    %v1564 = vadd.f32 %v1558, %v1562
    %s1565 = sld [smem:[#allocation8 + $0x6b]]
    %v1566 = vstv %s1565
    %v1567 = vmul.f32 %v170, %v1566
    %v1568 = vmul.f32 %v171, %v1566
    %v1571 = vrot.slane %v1567, 1
    %v1572 = vrot.slane %v1568, 1
    %v1573 = vsel %vm72, %v1571, %v1572
    %v1576 = vadd.f32 %v1563, %v1573
    %v1577 = vadd.f32 %v1564, %v1572
    %s1578 = sld [smem:[#allocation8 + $0x6c]]
    %v1579 = vstv %s1578
    %v1580 = vmul.f32 %v170, %v1579
    %v1581 = vmul.f32 %v171, %v1579
    %v1584 = vrot.slane %v1580, 2
    %v1585 = vrot.slane %v1581, 2
    %v1586 = vsel %vm86, %v1584, %v1585
    %v1589 = vadd.f32 %v1576, %v1586
    %v1590 = vadd.f32 %v1577, %v1585
    %s1591 = sld [smem:[#allocation8 + $0x6d]]
    %v1592 = vstv %s1591
    %v1593 = vmul.f32 %v206, %v1592
    %v1594 = vmul.f32 %v207, %v1592
    %v1595 = vadd.f32 %v1589, %v1593
    %v1596 = vadd.f32 %v1590, %v1594
    %s1597 = sld [smem:[#allocation8 + $0x6e]]
    %v1598 = vstv %s1597
    %v1599 = vmul.f32 %v206, %v1598
    %v1600 = vmul.f32 %v207, %v1598
    %v1603 = vrot.slane %v1599, 1
    %v1604 = vrot.slane %v1600, 1
    %v1605 = vsel %vm72, %v1603, %v1604
    %v1608 = vadd.f32 %v1595, %v1605
    %v1609 = vadd.f32 %v1596, %v1604
    %s1610 = sld [smem:[#allocation8 + $0x6f]]
    %v1611 = vstv %s1610
    %v1612 = vmul.f32 %v206, %v1611
    %v1613 = vmul.f32 %v207, %v1611
    %v1616 = vrot.slane %v1612, 2
    %v1617 = vrot.slane %v1613, 2
    %v1618 = vsel %vm86, %v1616, %v1617
    %v1621 = vadd.f32 %v1608, %v1618
    %v1622 = vadd.f32 %v1609, %v1617
    %s1623 = sld [smem:[#allocation8 + $0x77]]
    %v1624 = vstv %s1623
    %v1625 = vadd.f32 %v1621, %v1624
    %v1626 = vadd.f32 %v1622, %v1624
    %v1627 = vmax.f32 %v1625, 0.0
    %v1628 = vmax.f32 %v1626, 0.0
    %v1631 = vrot.slane %v1627, 2
    %v1632 = vrot.slane %v1627, 4
    %v1633 = vrot.slane %v1627, 6
    %v1634 = vrot.slane %v1628, 2
    %v1639 = vsel %vm350, %v1627, -inf
    %v1640 = vrot.slane %v1639, 4
    %v1641 = vmax.f32 %v1639, %v1640
    %v1642 = vrot.slane %v1641, 2
    %v1643 = vmax.f32 %v1641, %v1642
    %v1644 = vrot.slane %v1643, 1
    %v1645 = vmax.f32 %v1643, %v1644
    %v1646 = vsel %vm350, %v1631, -inf
    %v1647 = vrot.slane %v1646, 4
    %v1648 = vmax.f32 %v1646, %v1647
    %v1649 = vrot.slane %v1648, 2
    %v1650 = vmax.f32 %v1648, %v1649
    %v1651 = vrot.slane %v1650, 1
    %v1652 = vmax.f32 %v1650, %v1651
    %v1653 = vsel %vm350, %v1632, -inf
    %v1654 = vrot.slane %v1653, 4
    %v1655 = vmax.f32 %v1653, %v1654
    %v1656 = vrot.slane %v1655, 2
    %v1657 = vmax.f32 %v1655, %v1656
    %v1658 = vrot.slane %v1657, 1
    %v1659 = vmax.f32 %v1657, %v1658
    %v1660 = vsel %vm350, %v1633, -inf
    %v1661 = vrot.slane %v1660, 4
    %v1662 = vmax.f32 %v1660, %v1661
    %v1663 = vrot.slane %v1662, 2
    %v1664 = vmax.f32 %v1662, %v1663
    %v1665 = vrot.slane %v1664, 1
    %v1666 = vmax.f32 %v1664, %v1665
    %v1667 = vsel %vm350, %v1628, -inf
    %v1668 = vrot.slane %v1667, 4
    %v1669 = vmax.f32 %v1667, %v1668
    %v1670 = vrot.slane %v1669, 2
    %v1671 = vmax.f32 %v1669, %v1670
    %v1672 = vrot.slane %v1671, 1
    %v1673 = vmax.f32 %v1671, %v1672
    %v1674 = vsel %vm350, %v1634, -inf
    %v1675 = vrot.slane %v1674, 4
    %v1676 = vmax.f32 %v1674, %v1675
    %v1677 = vrot.slane %v1676, 2
    %v1678 = vmax.f32 %v1676, %v1677
    %v1679 = vrot.slane %v1678, 1
    %v1680 = vmax.f32 %v1678, %v1679
    %vm1687 = vcmask 1041409
    %v1688 = vsel %vm1687, %v364, %v357
    %vm1689 = vcmask 1042434
    %v1690 = vsel %vm1689, %v371, %v1688
    %vm1691 = vcmask 1043459
    %v1692 = vsel %vm1691, %v378, %v1690
    %vm1693 = vcmask 1044484
    %v1694 = vsel %vm1693, %v385, %v1692
    %vm1695 = vcmask 1045509
    %v1696 = vsel %vm1695, %v392, %v1694
    %vm1704 = vcmask 1047559
    %v1705 = vsel %vm1704, %v548, %v541
    %v1706 = vsel %vm1687, %v562, %v555
    %v1707 = vsel %vm1689, %v569, %v1706
    %v1708 = vsel %vm1691, %v576, %v1707
    %v1717 = vsel %vm1695, %v732, %v725
    %vm1718 = vcmask 1046534
    %v1719 = vsel %vm1718, %v739, %v1717
    %v1720 = vsel %vm1704, %v746, %v1719
    %v1721 = vsel %vm1687, %v760, %v753
    %v1730 = vsel %vm1691, %v916, %v909
    %v1731 = vsel %vm1693, %v923, %v1730
    %v1732 = vsel %vm1695, %v930, %v1731
    %v1733 = vsel %vm1718, %v937, %v1732
    %v1734 = vsel %vm1704, %v944, %v1733
    %v1742 = vsel %vm1687, %v1100, %v1093
    %v1743 = vsel %vm1689, %v1107, %v1742
    %v1744 = vsel %vm1691, %v1114, %v1743
    %v1745 = vsel %vm1693, %v1121, %v1744
    %v1746 = vsel %vm1695, %v1128, %v1745
    %v1754 = vsel %vm1704, %v1284, %v1277
    %v1755 = vsel %vm1687, %v1298, %v1291
    %v1756 = vsel %vm1689, %v1305, %v1755
    %v1757 = vsel %vm1691, %v1312, %v1756
    %v1766 = vsel %vm1695, %v1468, %v1461
    %v1767 = vsel %vm1718, %v1475, %v1766
    %v1768 = vsel %vm1704, %v1482, %v1767
    %v1769 = vsel %vm1687, %v1496, %v1489
    %v1778 = vsel %vm1691, %v1652, %v1645
    %v1779 = vsel %vm1693, %v1659, %v1778
    %v1780 = vsel %vm1695, %v1666, %v1779
    %v1781 = vsel %vm1718, %v1673, %v1780
    %v1782 = vsel %vm1704, %v1680, %v1781
    %v1784 = vsel %vm86, %v1696, %v1705
    %vm1785 = vcmask 1043456
    %v1786 = vsel %vm1785, %v1708, %v1720
    %v1787 = vsel %vm350, %v1721, %v1734
    %v1788 = vsel %vm86, %v1746, %v1754
    %v1789 = vsel %vm1785, %v1757, %v1768
    %v1790 = vsel %vm350, %v1769, %v1782
    %v1791 = vld [vmem:[#allocation6] sm:$0xff]
    %v1792 = vld [vmem:[#allocation6 + $0x8] sm:$0xff]
    %v1793 = vld [vmem:[#allocation6 + $0x10] sm:$0xff]
    %v1794 = vld [vmem:[#allocation6 + $0x18] sm:$0xff]
    %1796 = vset.pattern.permute.xlu0 48
    %1797 = vperm.xlu0 %1796, %v1791
    %v1798 = vpop.permute.xlu0 %1797
    %1801 = vset.pattern.permute.xlu0 48
    %1802 = vperm.xlu0 %1801, %v1792
    %v1803 = vpop.permute.xlu0 %1802
    %1806 = vset.pattern.permute.xlu0 48
    %1807 = vperm.xlu0 %1806, %v1793
    %v1808 = vpop.permute.xlu0 %1807
    %1811 = vset.pattern.permute.xlu0 48
    %1812 = vperm.xlu0 %1811, %v1794
    %v1813 = vpop.permute.xlu0 %1812
    %vm1815 = vcmask 392192
    %v1816 = vsel %vm1815, %v1791, 0
    %v1818 = vsel %vm1815, %v1792, 0
    %v1820 = vsel %vm1815, %v1793, 0
    %v1822 = vsel %vm1815, %v1794, 0
    %1824 = vmatpush.msra.mxu0 0.0
    %1825 = vmatpush.msra.mxu0 0.0
    %1826 = vmatpush.msra.mxu0 0.0
    %1827 = vmatpush.msra.mxu0 0.0
    %1828 = vmatpush.msra.mxu0 0.0
    %1829 = vmatpush.msra.mxu0 0.0
    %1830 = vmatpush.msra.mxu0 0.0
    %1831 = vmatpush.msra.mxu0 0.0
    %1832 = vmatpush.msra.mxu0 0.0
    %1833 = vmatpush.msra.mxu0 0.0
    %1834 = vmatpush.msra.mxu0 %v1790
    %1835 = vmatpush.msra.mxu0 %v1789
    %1836 = vmatpush.msra.mxu0 %v1788
    %1837 = vmatpush.msra.mxu0 %v1787
    %1838 = vmatpush.msra.mxu0 %v1786
    %1839 = vmatpush.msra.mxu0 %v1784
    %1840 = vmatmul.f32.gmra.mxu0 %v1816
    %v1841 = vpop.f32.mrf.mxu0
    %v1842 = vadd.f32 %v1798, %v1841
    %1843 = vmatmul.f32.gmra.mxu0 %v1818
    %v1844 = vpop.f32.mrf.mxu0
    %v1845 = vadd.f32 %v1803, %v1844
    %1846 = vmatmul.f32.gmra.mxu0 %v1820
    %v1847 = vpop.f32.mrf.mxu0
    %v1848 = vadd.f32 %v1808, %v1847
    %1849 = vmatmul.f32.gmra.mxu0 %v1822
    %v1850 = vpop.f32.mrf.mxu0
    %v1851 = vadd.f32 %v1813, %v1850
    %1852 = vdwg.mxu0
    %v1853 = vmax.f32 %v1842, 0.0
    %v1854 = vmax.f32 %v1845, 0.0
    %v1855 = vmax.f32 %v1848, 0.0
    %v1856 = vmax.f32 %v1851, 0.0
    %1857 = vset.pattern.permute.xlu0 49
    %1858 = vperm.xlu0 %1857, %v1791
    %v1859 = vpop.permute.xlu0 %1858
    %1861 = vset.pattern.permute.xlu0 49
    %1862 = vperm.xlu0 %1861, %v1792
    %v1863 = vpop.permute.xlu0 %1862
    %1865 = vset.pattern.permute.xlu0 49
    %1866 = vperm.xlu0 %1865, %v1793
    %v1867 = vpop.permute.xlu0 %1866
    %1869 = vset.pattern.permute.xlu0 49
    %1870 = vperm.xlu0 %1869, %v1794
    %v1871 = vpop.permute.xlu0 %1870
    %v1873 = vmul.f32 %v1853, %v1859
    %v1874 = vmul.f32 %v1854, %v1863
    %v1875 = vmul.f32 %v1855, %v1867
    %v1876 = vmul.f32 %v1856, %v1871
    %v1877 = vadd.f32 %v1873, %v1874
    %v1878 = vadd.f32 %v1877, %v1875
    %v1879 = vadd.f32 %v1878, %v1876
    %v1880 = vrot.slane %v1879, 4
    %v1881 = vadd.f32 %v1879, %v1880
    %v1882 = vrot.slane %v1881, 2
    %v1883 = vadd.f32 %v1881, %v1882
    %v1884 = vrot.slane %v1883, 1
    %v1885 = vadd.f32 %v1883, %v1884
    %s1886 = sld [smem:[#allocation8 + $0x78]]
    %v1887 = vstv %s1886
    %v1888 = vadd.f32 %v1885, %v1887
    %v1889 = vand.u32 2147483647, %v1888
    %v1890 = vsub.f32 0.0, %v1889
    %v1891 = vmul.f32 %v1890, 1.442695
    %v1892 = vpow.pop %v1891
    %vm1893 = vcmp.ge.f32.partialorder %v1888, 0.0
    %v1894 = vadd.f32 %v1892, 1.0
    %v1895 = vrcp.pop %v1894
    %v1896 = vmul.f32 %v1894, %v1895
    %v1897 = vsub.f32 1.0, %v1896
    %v1898 = vmul.f32 %v1895, %v1897
    %v1899 = vadd.f32 %v1895, %v1898
    %vm1900 = vweird.f32 %v1894
    %vm1901 = vweird.f32 %v1895
    %vm1902 = vmor %vm1900, %vm1901
    %v1903 = vsel %vm1902, %v1895, %v1899
    %v1904 = vand.u32 2147483647, %v1894
    %vm1905 = vcmp.eq.f32.partialorder %v1904, 8.507059e+37
    %v1906 = vand.u32 %v1894, 2147483648
    %v1907 = vor.u32 1.1754944e-38, %v1906
    %v1908 = vsel %vm1905, %v1907, %v1903
    %v1909 = vmul.f32 1.0, %v1908
    %v1910 = vmul.f32 %v1892, %v1908
    %v1911 = vsel %vm1893, %v1909, %v1910
    %1912 = vst [vmem:[#allocation9] sm:$0x1] %v1911
    // Predicated region
    $region26: #{tpu_custom_call.1} parent=1 // pred_check
      _
    $region27: #{tpu_custom_call.1} parent=1 // pred_check_branch
      %1914 = sbr.rel (0) target = $region29
    $region28: #{tpu_custom_call.1} parent=1 // pred_region
      %1916 = vsyncadd [#allocation4], 0
      %s1918 = sshll.u32 [#allocation9], 4
      %s1919 = int_to_ptr.vmem [resolvable:$true] %s1918
      %s1920 = sshll.u32 %s3, 4
      %s1921 = int_to_ptr.hbm [resolvable:$true] %s1920
      %1923 = dma.vmem_to_hbm [thread:$0]  %s1919, 16, %s1921, [#allocation4]
    $region29: #{tpu_custom_call.1} parent=1 // pred_fallthru
      _
    // Predicated region
    $region30: #{tpu_custom_call.1} parent=1 // pred_check
      _
    $region31: #{tpu_custom_call.1} parent=1 // pred_check_branch
      %1925 = sbr.rel (0) target = $region33
    $region32: #{tpu_custom_call.1} parent=1 // pred_region
      %1927 = dma.done [#allocation4], 16
    $region33: #{tpu_custom_call.1} parent=1 // pred_fallthru
      _
    %1928 = vsyncpa [#allocation3], 1
    %1929 = vsyncpa [#allocation7], 1
    %1930 = vsyncpa [#allocation4], 1
    %1931 = vsyncpa [#allocation5], 1

</llo_original>
